<compile_context>
chip_gen: v7x
topology: tpu7x:2x2x1
jax: 0.10.0
libtpu: 0.0.40
codegen_flags: <defaults>
</compile_context>

<pallas_src>
import jax
import jax.numpy as jnp
from jax import lax
from jax.experimental import pallas as pl
from jax.experimental.pallas import tpu as pltpu


# ---------------------------------------------------------------------------
# Kernels
# ---------------------------------------------------------------------------
def _conv_relu_pool_kernel(xg_ref, w_ref, b_ref, o_ref):
    """Fused conv-as-GEMM + 2x2 max-pool + bias + ReLU on one row-group tile.

    xg_ref: (4, tpg, g*kkc) bf16 im2col patches; axis 0 = pool-window position,
                             g pooled pixels packed per GEMM row.
    w_ref : (g*kkc, g*cout) bf16 block-diagonal conv weights (kron(I_g, W)).
    b_ref : (1, g*cout)     f32 bias, tiled g times.
    o_ref : (tpg, g*cout)   f32 pooled activations (lane-dense, >=128 lanes).
    """
    tpg = o_ref.shape[0]
    gk = xg_ref.shape[2]
    # Collapse the pool-position axis into M: one big MXU matmul instead of
    # four small ones.  tpg is a multiple of 16, so this reshape is a
    # layout-preserving no-op (sublane-tile aligned for bf16).
    x2d = xg_ref[...].reshape(4 * tpg, gk)
    res = jnp.dot(x2d, w_ref[...], preferred_element_type=jnp.float32)
    # 2x2 max-pool = elementwise max over the four pool-position slabs.
    pooled = jnp.maximum(jnp.maximum(res[0:tpg], res[tpg:2 * tpg]),
                         jnp.maximum(res[2 * tpg:3 * tpg], res[3 * tpg:4 * tpg]))
    # Bias + ReLU after the pool: max_j relu(a_j + b) == relu(max_j a_j + b).
    o_ref[...] = jnp.maximum(pooled + b_ref[...], 0.0).astype(o_ref.dtype)


def _fc_head_kernel(x_ref, w1_ref, b1_ref, w2_ref, b2_ref, o_ref):
    """Fused fc1 + ReLU + fc2 on one batch tile (lane-dense padded logits)."""
    h = jnp.dot(x_ref[...], w1_ref[...], preferred_element_type=jnp.float32)
    h = jnp.maximum(h + b1_ref[...], 0.0)
    out = jnp.dot(h.astype(w2_ref.dtype), w2_ref[...],
                  preferred_element_type=jnp.float32)
    o_ref[...] = (out + b2_ref[...]).astype(o_ref.dtype)


# ---------------------------------------------------------------------------
# Tiling / layout helpers
# ---------------------------------------------------------------------------
_GROUP_TILE_CAP = 128      # row-group tile cap  ->  dot M dim up to 4*128 = 512
_BF16_SUBLANE = 16         # bf16 sublane tile (keeps the in-kernel reshape a no-op)


def _round_up(x, m):
    return -(-x // m) * m


def _choose_tiles(count, cap, align, align_single=False):
    """Pick (tile, padded_count) for a 1-D grid over `count` rows / groups.

    Prefers a single full-extent block (grid=(1,)) for small problems, then a
    large multiple-of-`align` divisor (no padding); only pads as a last resort.
    """
    if not align_single and count <= cap:
        return count, count                     # single full-extent block
    c = _round_up(count, align)
    if c <= cap:
        return c, c
    for t in range(cap - cap % align, align - 1, -align):
        if c % t == 0 and t >= cap // 2:
            return t, c                         # big divisor, no extra padding
    return cap, _round_up(c, cap)


def _im2col_pool_windows(x, k):
    """(N, H, W, C) -> (4, N*(H//2)*(W//2), k*k*C).

    Pure data rearrangement (XLA side): zero-pad ('same'), extract the k*k
    taps, and group rows by 2x2 pooling window so the kernel can max-reduce
    them.  Done in bf16 so the 9x-replicated tensor costs half the HBM bytes.
    """
    n, h, w, c = x.shape
    pad = k // 2
    xp = jnp.pad(x, ((0, 0), (pad, pad), (pad, pad), (0, 0)))
    taps = [xp[:, ky:ky + h, kx:kx + w, :] for ky in range(k) for kx in range(k)]
    f = jnp.concatenate(taps, axis=-1)                       # (N, H, W, k*k*C)
    f = f.reshape(n, h // 2, 2, w // 2, 2, k * k * c)
    f = jnp.transpose(f, (2, 4, 0, 1, 3, 5))                 # (2,2,N,H/2,W/2,kkC)
    return f.reshape(4, n * (h // 2) * (w // 2), k * k * c)


# ---------------------------------------------------------------------------
# Wrappers
# ---------------------------------------------------------------------------
def _conv_relu_pool_layer(x_nhwc, w, b):
    """One Conv2d(3x3, same) + ReLU + MaxPool(2,2) layer via a Pallas kernel."""
    n, h, wd, cin = x_nhwc.shape
    assert h % 2 == 0 and wd % 2 == 0, "spatial dims must be even for 2x2 pooling"
    k = w.shape[0]
    cout = w.shape[-1]
    hp, wp = h // 2, wd // 2
    rows = n * hp * wp
    kkc = k * k * cin

    # Lane-packing factor: pack g pooled pixels per GEMM row so the output
    # tile is >= 128 lanes wide (lane-dense stores) with no in-kernel lane
    # reshuffle.  Fall back to g=1 if it does not divide the row count.
    g = 128 // cout if (cout < 128 and 128 % cout == 0) else 1
    while rows % g:
        g //= 2

    # bf16 im2col, then pack g consecutive pixels per row (free reshape).
    xcol = _im2col_pool_windows(x_nhwc.astype(jnp.bfloat16), k)   # (4, rows, kkc)
    rg = rows // g
    xcol = xcol.reshape(4, rg, g * kkc)

    tpg, rg_pad = _choose_tiles(rg, _GROUP_TILE_CAP, _BF16_SUBLANE,
                                align_single=True)
    if rg_pad != rg:                       # small alignment pad only (<=15 groups
        xcol = jnp.pad(xcol, ((0, 0), (0, rg_pad - rg), (0, 0)))   # in practice)

    # Block-diagonal weights: each packed pixel hits its own copy of W and
    # lands in its own cout-wide output segment.
    wmat = w.reshape(kkc, cout)
    if g > 1:
        wmat = jnp.kron(jnp.eye(g, dtype=wmat.dtype), wmat)       # (g*kkc, g*cout)
    wmat = wmat.astype(jnp.bfloat16)
    bias = jnp.tile(b, (1, g)).astype(jnp.float32)                # (1, g*cout)

    gk, gcout = g * kkc, g * cout
    flops = 2 * 4 * rows * kkc * cout
    bytes_accessed = (2 * (xcol.size + wmat.size)
                      + 4 * (bias.size + rg_pad * gcout))

    out = pl.pallas_call(
        _conv_relu_pool_kernel,
        out_shape=jax.ShapeDtypeStruct((rg_pad, gcout), jnp.float32),
        grid_spec=pltpu.PrefetchScalarGridSpec(
            num_scalar_prefetch=0,
            grid=(rg_pad // tpg,),
            in_specs=[
                pl.BlockSpec((4, tpg, gk), lambda i: (0, i, 0)),
                # constant index maps: weights/bias fetched once, stay in VMEM
                pl.BlockSpec((gk, gcout), lambda i: (0, 0)),
                pl.BlockSpec((1, gcout), lambda i: (0, 0)),
            ],
            out_specs=pl.BlockSpec((tpg, gcout), lambda i: (i, 0)),
        ),
        compiler_params=pltpu.CompilerParams(
            dimension_semantics=("parallel",),
            vmem_limit_bytes=32 * 1024 * 1024,
        ),
        cost_estimate=pl.CostEstimate(
            flops=flops, transcendentals=0, bytes_accessed=bytes_accessed),
    )(xcol, wmat, bias)

    # Undo the packing with free, contiguous reshapes.
    return out[:rg].reshape(rows, cout).reshape(n, hp, wp, cout)


def _fc_head(feats, w1, b1, w2p, b2p):
    """Fused fc1 + ReLU + fc2 (logits already padded to a lane-dense width)."""
    n, f = feats.shape
    hidden = w1.shape[1]
    c_pad = w2p.shape[1]

    tm, n_pad = _choose_tiles(n, cap=256, align=8, align_single=False)
    if n_pad != n:
        feats = jnp.pad(feats, ((0, n_pad - n), (0, 0)))

    feats = feats.astype(jnp.bfloat16)
    w1 = w1.astype(jnp.bfloat16)
    w2p = w2p.astype(jnp.bfloat16)

    flops = 2 * n_pad * (f * hidden + hidden * c_pad)
    bytes_accessed = (2 * (feats.size + w1.size + w2p.size)
                      + 4 * (b1.size + b2p.size + n_pad * c_pad))

    out = pl.pallas_call(
        _fc_head_kernel,
        out_shape=jax.ShapeDtypeStruct((n_pad, c_pad), jnp.float32),
        grid_spec=pltpu.PrefetchScalarGridSpec(
            num_scalar_prefetch=0,
            grid=(n_pad // tm,),
            in_specs=[
                pl.BlockSpec((tm, f), lambda i: (i, 0)),
                pl.BlockSpec((f, hidden), lambda i: (0, 0)),
                pl.BlockSpec((1, hidden), lambda i: (0, 0)),
                pl.BlockSpec((hidden, c_pad), lambda i: (0, 0)),
                pl.BlockSpec((1, c_pad), lambda i: (0, 0)),
            ],
            out_specs=pl.BlockSpec((tm, c_pad), lambda i: (i, 0)),
        ),
        compiler_params=pltpu.CompilerParams(
            dimension_semantics=("parallel",),
            vmem_limit_bytes=32 * 1024 * 1024,
        ),
        cost_estimate=pl.CostEstimate(
            flops=flops, transcendentals=0, bytes_accessed=bytes_accessed),
    )(feats, w1, b1, w2p, b2p)

    return out[:n]


@jax.jit
def cnn_forward(x_nchw, params):
    """Forward pass matching CNN.forward: (N, Ch, H, W) -> (N, n_classes) logits."""
    x = jnp.transpose(x_nchw, (0, 2, 3, 1)).astype(jnp.float32)   # NCHW -> NHWC

    for layer in (1, 2, 3):
        x = _conv_relu_pool_layer(
            x, params[f"conv{layer}_w"], params[f"conv{layer}_b"])

    n = x.shape[0]
    # TODO(synk): flatten is in NHWC order; fc1 weights ported from a PyTorch
    # (NCHW-flatten) checkpoint must be permuted accordingly.
    feats = x.reshape(n, -1)

    n_classes = params["fc2_w"].shape[1]
    c_pad = _round_up(max(n_classes, 128), 128)      # lane-dense logits block
    w2p = jnp.pad(params["fc2_w"], ((0, 0), (0, c_pad - n_classes)))
    b2p = jnp.pad(params["fc2_b"], ((0, 0), (0, c_pad - n_classes)))

    logits = _fc_head(feats, params["fc1_w"], params["fc1_b"], w2p, b2p)
    return logits[:, :n_classes]


# ---------------------------------------------------------------------------
# Parameter init (PyTorch default U(-1/sqrt(fan_in), 1/sqrt(fan_in))) and a
# pure-JAX reference (with matching bf16 operand quantization) for checking.
# ---------------------------------------------------------------------------
def init_cnn_params(key, input_channels, n_classes, img_width=16, img_height=16,
                    filters=(32, 64, 128), kernel_size=3):
    assert kernel_size % 2 == 1, "Kernel size must be odd"
    params = {}
    cins = (input_channels,) + tuple(filters[:-1])
    for idx, (cin, cout) in enumerate(zip(cins, filters), start=1):
        key, kw, kb = jax.random.split(key, 3)
        fan_in = cin * kernel_size * kernel_size
        bound = 1.0 / (fan_in ** 0.5)
        params[f"conv{idx}_w"] = jax.random.uniform(
            kw, (kernel_size, kernel_size, cin, cout), jnp.float32, -bound, bound)
        params[f"conv{idx}_b"] = jax.random.uniform(
            kb, (1, cout), jnp.float32, -bound, bound)

    feat = filters[2] * (img_height // 8) * (img_width // 8)
    for idx, (fi, fo) in enumerate(((feat, filters[2]), (filters[2], n_classes)),
                                   start=1):
        key, kw, kb = jax.random.split(key, 3)
        bound = 1.0 / (fi ** 0.5)
        params[f"fc{idx}_w"] = jax.random.uniform(
            kw, (fi, fo), jnp.float32, -bound, bound)
        params[f"fc{idx}_b"] = jax.random.uniform(
            kb, (1, fo), jnp.float32, -bound, bound)
    return params


def _q(x):
    """bf16 operand quantization used by the kernels (matmul inputs only)."""
    return x.astype(jnp.bfloat16).astype(jnp.float32)


def cnn_reference(x_nchw, params):
    """Pure-JAX reference (conv/relu/pool x3, fc1+relu, fc2) with the same
    bf16-operand / fp32-accumulate quantization as the Pallas kernels."""
    x = jnp.transpose(x_nchw, (0, 2, 3, 1)).astype(jnp.float32)
    for layer in (1, 2, 3):
        w = params[f"conv{layer}_w"]
        b = params[f"conv{layer}_b"]
        y = lax.conv_general_dilated(
            _q(x), _q(w), window_strides=(1, 1), padding="SAME",
            dimension_numbers=("NHWC", "HWIO", "NHWC"))
        y = jnp.maximum(y + b.reshape(1, 1, 1, -1), 0.0)
        n, h, wd, c = y.shape
        x = y.reshape(n, h // 2, 2, wd // 2, 2, c).max(axis=(2, 4))
    feats = x.reshape(x.shape[0], -1)
    h = jnp.maximum(_q(feats) @ _q(params["fc1_w"]) + params["fc1_b"], 0.0)
    return _q(h) @ _q(params["fc2_w"]) + params["fc2_b"]


if __name__ == "__main__":
    key = jax.random.PRNGKey(0)
    k_params, k_x = jax.random.split(key)

    batch, in_ch, img, n_classes = 2, 4, 16, 10

    params = init_cnn_params(k_params, in_ch, n_classes,
                             img_width=img, img_height=img)
    x = jax.random.normal(k_x, (batch, in_ch, img, img), jnp.float32)

    logits = jax.block_until_ready(cnn_forward(x, params))

    ref = cnn_reference(x, params)
    assert logits.shape == (batch, n_classes)
    max_err = float(jnp.max(jnp.abs(logits - ref)))
    assert jnp.allclose(logits, ref, atol=5e-3, rtol=5e-3), (
        f"mismatch vs reference, max abs err = {max_err}")

    print("KERNEL_OK")
</pallas_src>

<mosaic_0001>
module attributes {stable_mosaic.version = 11 : i64} {
  func.func @_conv_relu_pool_kernel(%arg0: i32, %arg1: memref<4x32x144xbf16, #tpu.memory_space<vmem>>, %arg2: memref<144x128xbf16, #tpu.memory_space<vmem>>, %arg3: memref<1x128xf32, #tpu.memory_space<vmem>>, %arg4: memref<32x128xf32, #tpu.memory_space<vmem>>) attributes {dimension_semantics = [#tpu.dimension_semantics<parallel>], iteration_bounds = array<i64: 1>, scalar_prefetch = 0 : i64, scratch_operands = 0 : i64, tpu.core_type = #tpu.core_type<tc>, window_params = [{transform_indices = @transform_0, window_bounds = array<i64: 4, 32, 144>}, {pipeline_mode = #tpu.pipeline_mode<synchronous>, transform_indices = @transform_1, window_bounds = array<i64: 144, 128>}, {pipeline_mode = #tpu.pipeline_mode<synchronous>, transform_indices = @transform_2, window_bounds = array<i64: 1, 128>}, {transform_indices = @transform_3, window_bounds = array<i64: 32, 128>}]} {
    %c0 = arith.constant 0 : index
    %c0_0 = arith.constant 0 : index
    %c0_1 = arith.constant 0 : index
    %0 = vector.load %arg1[%c0, %c0_0, %c0_1] : memref<4x32x144xbf16, #tpu.memory_space<vmem>>, vector<4x32x144xbf16>
    %1 = vector.shape_cast %0 : vector<4x32x144xbf16> to vector<128x144xbf16>
    %c0_2 = arith.constant 0 : index
    %c0_3 = arith.constant 0 : index
    %2 = vector.load %arg2[%c0_2, %c0_3] : memref<144x128xbf16, #tpu.memory_space<vmem>>, vector<144x128xbf16>
    %cst = arith.constant dense<0.000000e+00> : vector<128x128xf32>
    %3 = tpu.matmul %1, %2, %cst {dimension_numbers = #tpu.dot_dimension_numbers<[1], [0], [0], [1], [0, 0, 1, 1], [], []>} : vector<128x144xbf16>, vector<144x128xbf16>, vector<128x128xf32> -> vector<128x128xf32>
    %4 = vector.extract_strided_slice %3 {offsets = [0, 0], sizes = [32, 128], strides = [1, 1]} : vector<128x128xf32> to vector<32x128xf32>
    %5 = vector.extract_strided_slice %3 {offsets = [32, 0], sizes = [32, 128], strides = [1, 1]} : vector<128x128xf32> to vector<32x128xf32>
    %6 = arith.maximumf %4, %5 : vector<32x128xf32>
    %7 = vector.extract_strided_slice %3 {offsets = [64, 0], sizes = [32, 128], strides = [1, 1]} : vector<128x128xf32> to vector<32x128xf32>
    %8 = vector.extract_strided_slice %3 {offsets = [96, 0], sizes = [32, 128], strides = [1, 1]} : vector<128x128xf32> to vector<32x128xf32>
    %9 = arith.maximumf %7, %8 : vector<32x128xf32>
    %10 = arith.maximumf %6, %9 : vector<32x128xf32>
    %c0_4 = arith.constant 0 : index
    %c0_5 = arith.constant 0 : index
    %11 = vector.load %arg3[%c0_4, %c0_5] : memref<1x128xf32, #tpu.memory_space<vmem>>, vector<1x128xf32>
    %12 = vector.broadcast %11 : vector<1x128xf32> to vector<32x128xf32>
    %13 = arith.addf %10, %12 : vector<32x128xf32>
    %cst_6 = arith.constant 0.000000e+00 : f32
    %14 = vector.broadcast %cst_6 : f32 to vector<32x128xf32>
    %15 = arith.maximumf %13, %14 : vector<32x128xf32>
    %c0_7 = arith.constant 0 : index
    %c0_8 = arith.constant 0 : index
    %16 = vector.load %arg4[%c0_7, %c0_8] : memref<32x128xf32, #tpu.memory_space<vmem>>, vector<32x128xf32>
    tpu.vector_store %arg4[%c0_7, %c0_8], %15 {strides = array<i32>} : memref<32x128xf32, #tpu.memory_space<vmem>>, vector<32x128xf32>,
    return
  }
  func.func @transform_0(%arg0: i32) -> (i32, i32, i32) {
    %c0_i32 = arith.constant 0 : i32
    %c0_i32_0 = arith.constant 0 : i32
    %c0_i32_1 = arith.constant 0 : i32
    return %c0_i32, %arg0, %c0_i32_0 : i32, i32, i32
  }
  func.func @transform_1(%arg0: i32) -> (i32, i32) {
    %c0_i32 = arith.constant 0 : i32
    %c0_i32_0 = arith.constant 0 : i32
    %c0_i32_1 = arith.constant 0 : i32
    return %c0_i32, %c0_i32_0 : i32, i32
  }
  func.func @transform_2(%arg0: i32) -> (i32, i32) {
    %c0_i32 = arith.constant 0 : i32
    %c0_i32_0 = arith.constant 0 : i32
    %c0_i32_1 = arith.constant 0 : i32
    return %c0_i32, %c0_i32_0 : i32, i32
  }
  func.func @transform_3(%arg0: i32) -> (i32, i32) {
    %c0_i32 = arith.constant 0 : i32
    %c0_i32_0 = arith.constant 0 : i32
    return %arg0, %c0_i32 : i32, i32
  }
}

module attributes {stable_mosaic.version = 11 : i64} {
  func.func @_conv_relu_pool_kernel(%arg0: i32, %arg1: memref<4x16x576xbf16, #tpu.memory_space<vmem>>, %arg2: memref<576x128xbf16, #tpu.memory_space<vmem>>, %arg3: memref<1x128xf32, #tpu.memory_space<vmem>>, %arg4: memref<16x128xf32, #tpu.memory_space<vmem>>) attributes {dimension_semantics = [#tpu.dimension_semantics<parallel>], iteration_bounds = array<i64: 1>, scalar_prefetch = 0 : i64, scratch_operands = 0 : i64, tpu.core_type = #tpu.core_type<tc>, window_params = [{transform_indices = @transform_0, window_bounds = array<i64: 4, 16, 576>}, {pipeline_mode = #tpu.pipeline_mode<synchronous>, transform_indices = @transform_1, window_bounds = array<i64: 576, 128>}, {pipeline_mode = #tpu.pipeline_mode<synchronous>, transform_indices = @transform_2, window_bounds = array<i64: 1, 128>}, {transform_indices = @transform_3, window_bounds = array<i64: 16, 128>}]} {
    %c0 = arith.constant 0 : index
    %c0_0 = arith.constant 0 : index
    %c0_1 = arith.constant 0 : index
    %0 = vector.load %arg1[%c0, %c0_0, %c0_1] : memref<4x16x576xbf16, #tpu.memory_space<vmem>>, vector<4x16x576xbf16>
    %1 = vector.shape_cast %0 : vector<4x16x576xbf16> to vector<64x576xbf16>
    %c0_2 = arith.constant 0 : index
    %c0_3 = arith.constant 0 : index
    %2 = vector.load %arg2[%c0_2, %c0_3] : memref<576x128xbf16, #tpu.memory_space<vmem>>, vector<576x128xbf16>
    %cst = arith.constant dense<0.000000e+00> : vector<64x128xf32>
    %3 = tpu.matmul %1, %2, %cst {dimension_numbers = #tpu.dot_dimension_numbers<[1], [0], [0], [1], [0, 0, 1, 1], [], []>} : vector<64x576xbf16>, vector<576x128xbf16>, vector<64x128xf32> -> vector<64x128xf32>
    %4 = vector.extract_strided_slice %3 {offsets = [0, 0], sizes = [16, 128], strides = [1, 1]} : vector<64x128xf32> to vector<16x128xf32>
    %5 = vector.extract_strided_slice %3 {offsets = [16, 0], sizes = [16, 128], strides = [1, 1]} : vector<64x128xf32> to vector<16x128xf32>
    %6 = arith.maximumf %4, %5 : vector<16x128xf32>
    %7 = vector.extract_strided_slice %3 {offsets = [32, 0], sizes = [16, 128], strides = [1, 1]} : vector<64x128xf32> to vector<16x128xf32>
    %8 = vector.extract_strided_slice %3 {offsets = [48, 0], sizes = [16, 128], strides = [1, 1]} : vector<64x128xf32> to vector<16x128xf32>
    %9 = arith.maximumf %7, %8 : vector<16x128xf32>
    %10 = arith.maximumf %6, %9 : vector<16x128xf32>
    %c0_4 = arith.constant 0 : index
    %c0_5 = arith.constant 0 : index
    %11 = vector.load %arg3[%c0_4, %c0_5] : memref<1x128xf32, #tpu.memory_space<vmem>>, vector<1x128xf32>
    %12 = vector.broadcast %11 : vector<1x128xf32> to vector<16x128xf32>
    %13 = arith.addf %10, %12 : vector<16x128xf32>
    %cst_6 = arith.constant 0.000000e+00 : f32
    %14 = vector.broadcast %cst_6 : f32 to vector<16x128xf32>
    %15 = arith.maximumf %13, %14 : vector<16x128xf32>
    %c0_7 = arith.constant 0 : index
    %c0_8 = arith.constant 0 : index
    %16 = vector.load %arg4[%c0_7, %c0_8] : memref<16x128xf32, #tpu.memory_space<vmem>>, vector<16x128xf32>
    tpu.vector_store %arg4[%c0_7, %c0_8], %15 {strides = array<i32>} : memref<16x128xf32, #tpu.memory_space<vmem>>, vector<16x128xf32>,
    return
  }
  func.func @transform_0(%arg0: i32) -> (i32, i32, i32) {
    %c0_i32 = arith.constant 0 : i32
    %c0_i32_0 = arith.constant 0 : i32
    %c0_i32_1 = arith.constant 0 : i32
    return %c0_i32, %arg0, %c0_i32_0 : i32, i32, i32
  }
  func.func @transform_1(%arg0: i32) -> (i32, i32) {
    %c0_i32 = arith.constant 0 : i32
    %c0_i32_0 = arith.constant 0 : i32
    %c0_i32_1 = arith.constant 0 : i32
    return %c0_i32, %c0_i32_0 : i32, i32
  }
  func.func @transform_2(%arg0: i32) -> (i32, i32) {
    %c0_i32 = arith.constant 0 : i32
    %c0_i32_0 = arith.constant 0 : i32
    %c0_i32_1 = arith.constant 0 : i32
    return %c0_i32, %c0_i32_0 : i32, i32
  }
  func.func @transform_3(%arg0: i32) -> (i32, i32) {
    %c0_i32 = arith.constant 0 : i32
    %c0_i32_0 = arith.constant 0 : i32
    return %arg0, %c0_i32 : i32, i32
  }
}

module attributes {stable_mosaic.version = 11 : i64} {
  func.func @_fc_head_kernel(%arg0: i32, %arg1: memref<2x512xbf16, #tpu.memory_space<vmem>>, %arg2: memref<512x128xbf16, #tpu.memory_space<vmem>>, %arg3: memref<1x128xf32, #tpu.memory_space<vmem>>, %arg4: memref<128x128xbf16, #tpu.memory_space<vmem>>, %arg5: memref<1x128xf32, #tpu.memory_space<vmem>>, %arg6: memref<2x128xf32, #tpu.memory_space<vmem>>) attributes {dimension_semantics = [#tpu.dimension_semantics<parallel>], iteration_bounds = array<i64: 1>, scalar_prefetch = 0 : i64, scratch_operands = 0 : i64, tpu.core_type = #tpu.core_type<tc>, window_params = [{transform_indices = @transform_0, window_bounds = array<i64: 2, 512>}, {pipeline_mode = #tpu.pipeline_mode<synchronous>, transform_indices = @transform_1, window_bounds = array<i64: 512, 128>}, {pipeline_mode = #tpu.pipeline_mode<synchronous>, transform_indices = @transform_2, window_bounds = array<i64: 1, 128>}, {pipeline_mode = #tpu.pipeline_mode<synchronous>, transform_indices = @transform_3, window_bounds = array<i64: 128, 128>}, {pipeline_mode = #tpu.pipeline_mode<synchronous>, transform_indices = @transform_4, window_bounds = array<i64: 1, 128>}, {transform_indices = @transform_5, window_bounds = array<i64: 2, 128>}]} {
    %c0 = arith.constant 0 : index
    %c0_0 = arith.constant 0 : index
    %0 = vector.load %arg1[%c0, %c0_0] : memref<2x512xbf16, #tpu.memory_space<vmem>>, vector<2x512xbf16>
    %c0_1 = arith.constant 0 : index
    %c0_2 = arith.constant 0 : index
    %1 = vector.load %arg2[%c0_1, %c0_2] : memref<512x128xbf16, #tpu.memory_space<vmem>>, vector<512x128xbf16>
    %cst = arith.constant dense<0.000000e+00> : vector<2x128xf32>
    %2 = tpu.matmul %0, %1, %cst {dimension_numbers = #tpu.dot_dimension_numbers<[1], [0], [0], [1], [0, 0, 1, 1], [], []>} : vector<2x512xbf16>, vector<512x128xbf16>, vector<2x128xf32> -> vector<2x128xf32>
    %c0_3 = arith.constant 0 : index
    %c0_4 = arith.constant 0 : index
    %3 = vector.load %arg3[%c0_3, %c0_4] : memref<1x128xf32, #tpu.memory_space<vmem>>, vector<1x128xf32>
    %4 = vector.broadcast %3 : vector<1x128xf32> to vector<2x128xf32>
    %5 = arith.addf %2, %4 : vector<2x128xf32>
    %cst_5 = arith.constant 0.000000e+00 : f32
    %6 = vector.broadcast %cst_5 : f32 to vector<2x128xf32>
    %7 = arith.maximumf %5, %6 : vector<2x128xf32>
    %8 = arith.truncf %7 : vector<2x128xf32> to vector<2x128xbf16>
    %c0_6 = arith.constant 0 : index
    %c0_7 = arith.constant 0 : index
    %9 = vector.load %arg4[%c0_6, %c0_7] : memref<128x128xbf16, #tpu.memory_space<vmem>>, vector<128x128xbf16>
    %cst_8 = arith.constant dense<0.000000e+00> : vector<2x128xf32>
    %10 = tpu.matmul %8, %9, %cst_8 {dimension_numbers = #tpu.dot_dimension_numbers<[1], [0], [0], [1], [0, 0, 1, 1], [], []>} : vector<2x128xbf16>, vector<128x128xbf16>, vector<2x128xf32> -> vector<2x128xf32>
    %c0_9 = arith.constant 0 : index
    %c0_10 = arith.constant 0 : index
    %11 = vector.load %arg5[%c0_9, %c0_10] : memref<1x128xf32, #tpu.memory_space<vmem>>, vector<1x128xf32>
    %12 = vector.broadcast %11 : vector<1x128xf32> to vector<2x128xf32>
    %13 = arith.addf %10, %12 : vector<2x128xf32>
    %c0_11 = arith.constant 0 : index
    %c0_12 = arith.constant 0 : index
    %14 = vector.load %arg6[%c0_11, %c0_12] : memref<2x128xf32, #tpu.memory_space<vmem>>, vector<2x128xf32>
    tpu.vector_store %arg6[%c0_11, %c0_12], %13 {strides = array<i32>} : memref<2x128xf32, #tpu.memory_space<vmem>>, vector<2x128xf32>,
    return
  }
  func.func @transform_0(%arg0: i32) -> (i32, i32) {
    %c0_i32 = arith.constant 0 : i32
    %c0_i32_0 = arith.constant 0 : i32
    return %arg0, %c0_i32 : i32, i32
  }
  func.func @transform_1(%arg0: i32) -> (i32, i32) {
    %c0_i32 = arith.constant 0 : i32
    %c0_i32_0 = arith.constant 0 : i32
    %c0_i32_1 = arith.constant 0 : i32
    return %c0_i32, %c0_i32_0 : i32, i32
  }
  func.func @transform_2(%arg0: i32) -> (i32, i32) {
    %c0_i32 = arith.constant 0 : i32
    %c0_i32_0 = arith.constant 0 : i32
    %c0_i32_1 = arith.constant 0 : i32
    return %c0_i32, %c0_i32_0 : i32, i32
  }
  func.func @transform_3(%arg0: i32) -> (i32, i32) {
    %c0_i32 = arith.constant 0 : i32
    %c0_i32_0 = arith.constant 0 : i32
    %c0_i32_1 = arith.constant 0 : i32
    return %c0_i32, %c0_i32_0 : i32, i32
  }
  func.func @transform_4(%arg0: i32) -> (i32, i32) {
    %c0_i32 = arith.constant 0 : i32
    %c0_i32_0 = arith.constant 0 : i32
    %c0_i32_1 = arith.constant 0 : i32
    return %c0_i32, %c0_i32_0 : i32, i32
  }
  func.func @transform_5(%arg0: i32) -> (i32, i32) {
    %c0_i32 = arith.constant 0 : i32
    %c0_i32_0 = arith.constant 0 : i32
    return %arg0, %c0_i32 : i32, i32
  }
}

</mosaic_0001>

<llo_original>
// kernel: mul.4
$region0: #{mul.4}
  %s0 = inlined_call_operand.vmem [shape: f32[3,3,4,32], index: 0, kind: input, shape index: {}]
  %s1 = inlined_call_operand.vmem [shape: f32[36,32], index: 1, kind: output, shape index: {}]
  $region1: #{mul.4} parent=0
    #allocation0 [shape = 'u8[36864]{0}', space=vmem, size = 0x9000, scoped, tag = 'scoped mem for input reshape']
    %s3 = sshllo.u32 0, 4
    %s4 = smul.addr 4, 8
    %s5 = scalar_lea.vmem %s0, %s4
    %v6 = vld [vmem:[%s5] sm:%s3]
    %s7 = scalar_lea.vmem [#allocation0], 64
    %8 = vst [vmem:[%s7] sm:%s3] %v6
    %s9 = smul.addr 4, 7
    %s10 = scalar_lea.vmem %s0, %s9
    %v11 = vld [vmem:[%s10] sm:%s3]
    %s12 = scalar_lea.vmem [#allocation0], 56
    %13 = vst [vmem:[%s12] sm:%s3] %v11
    %s14 = smul.addr 4, 6
    %s15 = scalar_lea.vmem %s0, %s14
    %v16 = vld [vmem:[%s15] sm:%s3]
    %s17 = scalar_lea.vmem [#allocation0], 48
    %18 = vst [vmem:[%s17] sm:%s3] %v16
    %s19 = smul.addr 4, 5
    %s20 = scalar_lea.vmem %s0, %s19
    %v21 = vld [vmem:[%s20] sm:%s3]
    %s22 = scalar_lea.vmem [#allocation0], 40
    %23 = vst [vmem:[%s22] sm:%s3] %v21
    %s24 = smul.addr 4, 4
    %s25 = scalar_lea.vmem %s0, %s24
    %v26 = vld [vmem:[%s25] sm:%s3]
    %s27 = scalar_lea.vmem [#allocation0], 32
    %28 = vst [vmem:[%s27] sm:%s3] %v26
    %s29 = smul.addr 4, 3
    %s30 = scalar_lea.vmem %s0, %s29
    %v31 = vld [vmem:[%s30] sm:%s3]
    %s32 = scalar_lea.vmem [#allocation0], 24
    %33 = vst [vmem:[%s32] sm:%s3] %v31
    %s34 = smul.addr 4, 2
    %s35 = scalar_lea.vmem %s0, %s34
    %v36 = vld [vmem:[%s35] sm:%s3]
    %s37 = scalar_lea.vmem [#allocation0], 16
    %38 = vst [vmem:[%s37] sm:%s3] %v36
    %s39 = scalar_lea.vmem %s0, 4
    %v40 = vld [vmem:[%s39] sm:%s3]
    %s41 = scalar_lea.vmem [#allocation0], 8
    %42 = vst [vmem:[%s41] sm:%s3] %v40
    %v43 = vld [vmem:[%s0] sm:%s3]
    %44 = vst [vmem:[#allocation0] sm:%s3] %v43
    %v45 = vld [vmem:[#allocation0] sm:$0xf]
    %vm46 = vcmask 261120
    %47 = vst.msk [vmem:[%s1] sm:$0xf] %vm46, %v45
    %s48 = scalar_lea.vmem [#allocation0], 8
    %v49 = vld [vmem:[%s48] sm:$0xf]
    %vm50 = vcmask 261120
    %s51 = scalar_lea.vmem %s1, 4
    %52 = vst.msk [vmem:[%s51] sm:$0xf] %vm50, %v49
    %s53 = scalar_lea.vmem [#allocation0], 16
    %v54 = vld [vmem:[%s53] sm:$0xf]
    %vm55 = vcmask 261120
    %s56 = scalar_lea.vmem %s1, 8
    %57 = vst.msk [vmem:[%s56] sm:$0xf] %vm55, %v54
    %s58 = scalar_lea.vmem [#allocation0], 24
    %v59 = vld [vmem:[%s58] sm:$0xf]
    %vm60 = vcmask 261120
    %s61 = scalar_lea.vmem %s1, 12
    %62 = vst.msk [vmem:[%s61] sm:$0xf] %vm60, %v59
    %s63 = scalar_lea.vmem [#allocation0], 32
    %v64 = vld [vmem:[%s63] sm:$0xf]
    %vm65 = vcmask 261120
    %s66 = scalar_lea.vmem %s1, 16
    %67 = vst.msk [vmem:[%s66] sm:$0xf] %vm65, %v64
    %s68 = scalar_lea.vmem [#allocation0], 40
    %v69 = vld [vmem:[%s68] sm:$0xf]
    %vm70 = vcmask 261120
    %s71 = scalar_lea.vmem %s1, 20
    %72 = vst.msk [vmem:[%s71] sm:$0xf] %vm70, %v69
    %s73 = scalar_lea.vmem [#allocation0], 48
    %v74 = vld [vmem:[%s73] sm:$0xf]
    %vm75 = vcmask 261120
    %s76 = scalar_lea.vmem %s1, 24
    %77 = vst.msk [vmem:[%s76] sm:$0xf] %vm75, %v74
    %s78 = scalar_lea.vmem [#allocation0], 56
    %v79 = vld [vmem:[%s78] sm:$0xf]
    %vm80 = vcmask 261120
    %s81 = scalar_lea.vmem %s1, 28
    %82 = vst.msk [vmem:[%s81] sm:$0xf] %vm80, %v79
    %s83 = scalar_lea.vmem [#allocation0], 64
    %v84 = vld [vmem:[%s83] sm:$0xf]
    %vm85 = vcmask 261120
    %s86 = scalar_lea.vmem %s1, 32
    %87 = vst.msk [vmem:[%s86] sm:$0xf] %vm85, %v84

// kernel: cnn_forward.4
$region0: #{cnn_forward.4}
  #allocation0 [shape = 'u32[]', space=smem, size = 0x4, offset = 0x4, fixed_abs, tag = 'smem constant byte address 0x4 - core index']
  #allocation1 [shape = 'u32[144,128]{1,0:T(1,128)}', space=vmem, size = 0x12000, scoped, tag = 'internal scratch']
  %s0 = inlined_call_operand.vmem [shape: bf16[4,32,144], index: 0, kind: input, shape index: {}]
  %s1 = inlined_call_operand.vmem [shape: bf16[144,128], index: 1, kind: input, shape index: {}]
  %s2 = inlined_call_operand.vmem [shape: f32[1,128], index: 2, kind: input, shape index: {}]
  %s3 = inlined_call_operand.vmem [shape: f32[32,128], index: 3, kind: output, shape index: {}]
  %s4 = sld [smem:[#allocation0]]
  $region22: #{cnn_forward.4} parent=0
    _
  %s6 = ssub.s32 1, %s4
  %s7 = scalar_select 0, %s6, %s4
  // Predicated region
  $region2: #{cnn_forward.4} parent=0 // pred_check
    _
  $region3: #{cnn_forward.4} parent=0 // pred_check_branch
    %9 = sbr.rel (0) target = $region5
  $region4: #{cnn_forward.4} parent=0 // pred_region
    _
  $region5: #{cnn_forward.4} parent=0 // pred_fallthru
    _
  // Predicated region
  $region6: #{cnn_forward.4} parent=0 // pred_check
    _
  $region7: #{cnn_forward.4} parent=0 // pred_check_branch
    %11 = sbr.rel (0) target = $region9
  $region8: #{cnn_forward.4} parent=0 // pred_region
    _
  $region9: #{cnn_forward.4} parent=0 // pred_fallthru
    _
  // Predicated region
  $region10: #{cnn_forward.4} parent=0 // pred_check
    _
  $region11: #{cnn_forward.4} parent=0 // pred_check_branch
    %13 = sbr.rel (0) target = $region13
  $region12: #{cnn_forward.4} parent=0 // pred_region
    _
  $region13: #{cnn_forward.4} parent=0 // pred_fallthru
    _
  %v15 = vld [vmem:[%s0] sm:$0xff]
  %v16 = vld [vmem:[%s0 + $0x8] sm:$0xff]
  %v17 = vld [vmem:[%s0 + $0x10] sm:$0xff]
  %v18 = vld [vmem:[%s0 + $0x18] sm:$0xff]
  %v19 = vld [vmem:[%s0 + $0x20] sm:$0xff]
  %v20 = vld [vmem:[%s0 + $0x28] sm:$0xff]
  %v21 = vld [vmem:[%s0 + $0x30] sm:$0xff]
  %v22 = vld [vmem:[%s0 + $0x38] sm:$0xff]
  %v23 = vld [vmem:[%s0 + $0x40] sm:$0xff]
  %v24 = vld [vmem:[%s0 + $0x48] sm:$0xff]
  %v25 = vld [vmem:[%s0 + $0x50] sm:$0xff]
  %v26 = vld [vmem:[%s0 + $0x58] sm:$0xff]
  %v27 = vld [vmem:[%s0 + $0x60] sm:$0xff]
  %v28 = vld [vmem:[%s0 + $0x68] sm:$0xff]
  %v29 = vld [vmem:[%s0 + $0x70] sm:$0xff]
  %v30 = vld [vmem:[%s0 + $0x78] sm:$0xff]
  %v31 = vld [vmem:[%s1] sm:$0xf]
  %v32 = vld [vmem:[%s1 + $0x4] sm:$0xf]
  %v33 = vld [vmem:[%s1 + $0x8] sm:$0xf]
  %v34 = vld [vmem:[%s1 + $0xc] sm:$0xf]
  %v35 = vld [vmem:[%s1 + $0x10] sm:$0xf]
  %v36 = vld [vmem:[%s1 + $0x14] sm:$0xf]
  %v37 = vld [vmem:[%s1 + $0x18] sm:$0xf]
  %v38 = vld [vmem:[%s1 + $0x1c] sm:$0xf]
  %v39 = vld [vmem:[%s1 + $0x20] sm:$0xf]
  %v40 = vld [vmem:[%s1 + $0x24] sm:$0xf]
  %v41 = vld [vmem:[%s1 + $0x28] sm:$0xf]
  %v42 = vld [vmem:[%s1 + $0x2c] sm:$0xf]
  %v43 = vld [vmem:[%s1 + $0x30] sm:$0xf]
  %v44 = vld [vmem:[%s1 + $0x34] sm:$0xf]
  %v45 = vld [vmem:[%s1 + $0x38] sm:$0xf]
  %v46 = vld [vmem:[%s1 + $0x3c] sm:$0xf]
  %v47 = vld [vmem:[%s1 + $0x40] sm:$0xf]
  %v48 = vld [vmem:[%s1 + $0x44] sm:$0xf]
  %v65 = vunpack.c.l.b16 %v15
  %v66 = vunpack.c.h.b16 %v15
  %v67 = vunpack.c.l.b16 %v16
  %v68 = vunpack.c.h.b16 %v16
  %v69 = vunpack.c.l.b16 %v17
  %v70 = vunpack.c.h.b16 %v17
  %v71 = vunpack.c.l.b16 %v18
  %v72 = vunpack.c.h.b16 %v18
  %v73 = vunpack.c.l.b16 %v19
  %v74 = vunpack.c.h.b16 %v19
  %v75 = vunpack.c.l.b16 %v20
  %v76 = vunpack.c.h.b16 %v20
  %v77 = vunpack.c.l.b16 %v21
  %v78 = vunpack.c.h.b16 %v21
  %v79 = vunpack.c.l.b16 %v22
  %v80 = vunpack.c.h.b16 %v22
  %v81 = vunpack.c.l.b16 %v23
  %v82 = vunpack.c.h.b16 %v23
  %v83 = vunpack.c.l.b16 %v24
  %v84 = vunpack.c.h.b16 %v24
  %v85 = vunpack.c.l.b16 %v25
  %v86 = vunpack.c.h.b16 %v25
  %v87 = vunpack.c.l.b16 %v26
  %v88 = vunpack.c.h.b16 %v26
  %v89 = vunpack.c.l.b16 %v27
  %v90 = vunpack.c.h.b16 %v27
  %v91 = vunpack.c.l.b16 %v28
  %v92 = vunpack.c.h.b16 %v28
  %v93 = vunpack.c.l.b16 %v29
  %v94 = vunpack.c.h.b16 %v29
  %v95 = vunpack.c.l.b16 %v30
  %v96 = vunpack.c.h.b16 %v30
  %v97 = vpack.c.b16 %v67, %v65
  %v98 = vpack.c.b16 %v68, %v66
  %v99 = vpack.c.b16 %v71, %v69
  %v100 = vpack.c.b16 %v72, %v70
  %v101 = vpack.c.b16 %v75, %v73
  %v102 = vpack.c.b16 %v76, %v74
  %v103 = vpack.c.b16 %v79, %v77
  %v104 = vpack.c.b16 %v80, %v78
  %v105 = vpack.c.b16 %v83, %v81
  %v106 = vpack.c.b16 %v84, %v82
  %v107 = vpack.c.b16 %v87, %v85
  %v108 = vpack.c.b16 %v88, %v86
  %v109 = vpack.c.b16 %v91, %v89
  %v110 = vpack.c.b16 %v92, %v90
  %v111 = vpack.c.b16 %v95, %v93
  %v112 = vpack.c.b16 %v96, %v94
  %v139 = vunpack.c.l.b16 %v31
  %v140 = vunpack.c.l.b16 %v32
  %v141 = vunpack.c.l.b16 %v33
  %v142 = vunpack.c.l.b16 %v34
  %v143 = vunpack.c.l.b16 %v35
  %v144 = vunpack.c.l.b16 %v36
  %v145 = vunpack.c.l.b16 %v37
  %v146 = vunpack.c.l.b16 %v38
  %v147 = vunpack.c.l.b16 %v39
  %v148 = vunpack.c.l.b16 %v40
  %v149 = vunpack.c.l.b16 %v41
  %v150 = vunpack.c.l.b16 %v42
  %v151 = vunpack.c.l.b16 %v43
  %v152 = vunpack.c.l.b16 %v44
  %v153 = vunpack.c.l.b16 %v45
  %v154 = vunpack.c.l.b16 %v46
  %v155 = vunpack.c.l.b16 %v47
  %v156 = vunpack.c.l.b16 %v48
  %v157 = vpack.c.b16 %v140, %v139
  %v158 = vpack.c.b16 %v142, %v141
  %v159 = vpack.c.b16 %v144, %v143
  %v160 = vpack.c.b16 %v146, %v145
  %v161 = vpack.c.b16 %v148, %v147
  %v162 = vpack.c.b16 %v150, %v149
  %v163 = vpack.c.b16 %v152, %v151
  %v164 = vpack.c.b16 %v154, %v153
  %v165 = vpack.c.b16 %v156, %v155
  %vm175 = vcmask 130048
  %v177 = vsel %vm175, %v98, 0
  %v180 = vsel %vm175, %v100, 0
  %v183 = vsel %vm175, %v102, 0
  %v186 = vsel %vm175, %v104, 0
  %v189 = vsel %vm175, %v106, 0
  %v192 = vsel %vm175, %v108, 0
  %v195 = vsel %vm175, %v110, 0
  %v198 = vsel %vm175, %v112, 0
  %200 = vmatprep.subr.bf16.mxu0 0
  %201 = vmatpush1.bf16.msra.mxu0 %v157
  %202 = vmatprep.subr.bf16.mxu0 0
  %203 = vmatpush1.bf16.msra.mxu0 %v158
  %204 = vmatprep.subr.bf16.mxu0 0
  %205 = vmatpush1.bf16.msra.mxu0 %v159
  %206 = vmatprep.subr.bf16.mxu0 0
  %207 = vmatpush1.bf16.msra.mxu0 %v160
  %208 = vmatprep.subr.bf16.mxu0 0
  %209 = vmatpush1.bf16.msra.mxu0 %v161
  %210 = vmatprep.subr.bf16.mxu0 0
  %211 = vmatpush1.bf16.msra.mxu0 %v162
  %212 = vmatprep.subr.bf16.mxu0 0
  %213 = vmatpush1.bf16.msra.mxu0 %v163
  %214 = vmatprep.subr.bf16.mxu0 0
  %215 = vmatpush1.bf16.msra.mxu0 %v164
  %216 = vmatprep.subr.bf16.mxu0 0
  %217 = vmatpush1.bf16.msra.mxu0 %v165
  %218 = vmatprep.subr.bf16.mxu0 0
  %219 = vmatpush1.bf16.msra.mxu0 0
  %220 = vmatprep.subr.bf16.mxu0 0
  %221 = vmatpush1.bf16.msra.mxu0 0
  %222 = vmatprep.subr.bf16.mxu0 0
  %223 = vmatpush1.bf16.msra.mxu0 0
  %224 = vmatprep.subr.bf16.mxu0 0
  %225 = vmatpush1.bf16.msra.mxu0 0
  %226 = vmatprep.subr.bf16.mxu0 0
  %227 = vmatpush1.bf16.msra.mxu0 0
  %228 = vmatprep.subr.bf16.mxu0 0
  %229 = vmatpush1.bf16.msra.mxu0 0
  %230 = vmatprep.subr.bf16.mxu0 0
  %231 = vmatpush1.bf16.msra.mxu0 0
  %232 = vmatprep.mubr.bf16.mxu0 %v177
  %233 = vmatmul.mubr.bf16.gmra.mrb[0].mxu0 %v97
  %v234 = vpop.f32.mrb[0].mxu0
  %v235 = vadd.f32 0.0, %v234
  %v236 = vpop.f32.mrb[0].mxu0
  %v237 = vpop.f32.mrb[0].mxu0
  %v238 = vadd.f32 0.0, %v237
  %v239 = vpop.f32.mrb[0].mxu0
  %240 = vmatprep.mubr.bf16.mxu0 %v180
  %241 = vmatmul.mubr.bf16.gmra.mrb[0].mxu0 %v99
  %v242 = vpop.f32.mrb[0].mxu0
  %v243 = vadd.f32 0.0, %v242
  %v244 = vpop.f32.mrb[0].mxu0
  %v245 = vpop.f32.mrb[0].mxu0
  %v246 = vadd.f32 0.0, %v245
  %v247 = vpop.f32.mrb[0].mxu0
  %248 = vmatprep.mubr.bf16.mxu0 %v183
  %249 = vmatmul.mubr.bf16.gmra.mrb[0].mxu0 %v101
  %v250 = vpop.f32.mrb[0].mxu0
  %v251 = vadd.f32 0.0, %v250
  %v252 = vpop.f32.mrb[0].mxu0
  %v253 = vpop.f32.mrb[0].mxu0
  %v254 = vadd.f32 0.0, %v253
  %v255 = vpop.f32.mrb[0].mxu0
  %256 = vmatprep.mubr.bf16.mxu0 %v186
  %257 = vmatmul.mubr.bf16.gmra.mrb[0].mxu0 %v103
  %v258 = vpop.f32.mrb[0].mxu0
  %v259 = vadd.f32 0.0, %v258
  %v260 = vpop.f32.mrb[0].mxu0
  %v261 = vpop.f32.mrb[0].mxu0
  %v262 = vadd.f32 0.0, %v261
  %v263 = vpop.f32.mrb[0].mxu0
  %264 = vmatprep.mubr.bf16.mxu0 %v189
  %265 = vmatmul.mubr.bf16.gmra.mrb[0].mxu0 %v105
  %v266 = vpop.f32.mrb[0].mxu0
  %v267 = vadd.f32 0.0, %v266
  %v268 = vpop.f32.mrb[0].mxu0
  %v269 = vpop.f32.mrb[0].mxu0
  %v270 = vadd.f32 0.0, %v269
  %v271 = vpop.f32.mrb[0].mxu0
  %272 = vmatprep.mubr.bf16.mxu0 %v192
  %273 = vmatmul.mubr.bf16.gmra.mrb[0].mxu0 %v107
  %v274 = vpop.f32.mrb[0].mxu0
  %v275 = vadd.f32 0.0, %v274
  %v276 = vpop.f32.mrb[0].mxu0
  %v277 = vpop.f32.mrb[0].mxu0
  %v278 = vadd.f32 0.0, %v277
  %v279 = vpop.f32.mrb[0].mxu0
  %280 = vmatprep.mubr.bf16.mxu0 %v195
  %281 = vmatmul.mubr.bf16.gmra.mrb[0].mxu0 %v109
  %v282 = vpop.f32.mrb[0].mxu0
  %v283 = vadd.f32 0.0, %v282
  %v284 = vpop.f32.mrb[0].mxu0
  %v285 = vpop.f32.mrb[0].mxu0
  %v286 = vadd.f32 0.0, %v285
  %v287 = vpop.f32.mrb[0].mxu0
  %288 = vmatprep.mubr.bf16.mxu0 %v198
  %289 = vmatmul.mubr.bf16.gmra.mrb[0].mxu0 %v111
  %v290 = vpop.f32.mrb[0].mxu0
  %v291 = vadd.f32 0.0, %v290
  %v292 = vpop.f32.mrb[0].mxu0
  %v293 = vpop.f32.mrb[0].mxu0
  %v294 = vadd.f32 0.0, %v293
  %v295 = vpop.f32.mrb[0].mxu0
  %296 = vdwg.mxu0
  %v297 = vmax.f32 %v235, %v251
  %v298 = vmax.f32 %v238, %v254
  %v299 = vmax.f32 %v243, %v259
  %v300 = vmax.f32 %v246, %v262
  %v301 = vmax.f32 %v267, %v283
  %v302 = vmax.f32 %v270, %v286
  %v303 = vmax.f32 %v275, %v291
  %v304 = vmax.f32 %v278, %v294
  %v305 = vmax.f32 %v297, %v301
  %v306 = vmax.f32 %v298, %v302
  %v307 = vmax.f32 %v299, %v303
  %v308 = vmax.f32 %v300, %v304
  %v309 = vld [vmem:[%s2] sm:$0x1]
  %v311 = vlaneseq
  %v312 = vshrl.u32 %v311, 7
  %v313 = vsub.s32 0, %v312
  %v314 = vrot.slane %v309, %v313
  %v316 = vadd.f32 %v305, %v314
  %v317 = vadd.f32 %v306, %v314
  %v318 = vadd.f32 %v307, %v314
  %v319 = vadd.f32 %v308, %v314
  %v320 = vmax.f32 %v316, 0.0
  %v321 = vmax.f32 %v317, 0.0
  %v322 = vmax.f32 %v318, 0.0
  %v323 = vmax.f32 %v319, 0.0
  %324 = vst [vmem:[%s3] sm:$0xff] %v320
  %325 = vst [vmem:[%s3 + $0x8] sm:$0xff] %v321
  %326 = vst [vmem:[%s3 + $0x10] sm:$0xff] %v322
  %327 = vst [vmem:[%s3 + $0x18] sm:$0xff] %v323
  // Predicated region
  $region14: #{cnn_forward.4} parent=0 // pred_check
    _
  $region15: #{cnn_forward.4} parent=0 // pred_check_branch
    %329 = sbr.rel (0) target = $region17
  $region16: #{cnn_forward.4} parent=0 // pred_region
    _
  $region17: #{cnn_forward.4} parent=0 // pred_fallthru
    _
  // Predicated region
  $region18: #{cnn_forward.4} parent=0 // pred_check
    _
  $region19: #{cnn_forward.4} parent=0 // pred_check_branch
    %331 = sbr.rel (0) target = $region21
  $region20: #{cnn_forward.4} parent=0 // pred_region
    _
  $region21: #{cnn_forward.4} parent=0 // pred_fallthru
    _

// kernel: cnn_forward.5
$region0: #{cnn_forward.5}
  #allocation0 [shape = 'u32[]', space=smem, size = 0x4, offset = 0x4, fixed_abs, tag = 'smem constant byte address 0x4 - core index']
  #allocation1 [shape = 'u32[144,128]{1,0:T(1,128)}', space=vmem, size = 0x12000, scoped, tag = 'internal scratch']
  %s0 = inlined_call_operand.vmem [shape: bf16[4,16,576], index: 0, kind: input, shape index: {}]
  %s1 = inlined_call_operand.vmem [shape: bf16[576,128], index: 1, kind: input, shape index: {}]
  %s2 = inlined_call_operand.vmem [shape: f32[1,128], index: 2, kind: input, shape index: {}]
  %s3 = inlined_call_operand.vmem [shape: f32[16,128], index: 3, kind: output, shape index: {}]
  %s4 = sld [smem:[#allocation0]]
  $region22: #{cnn_forward.5} parent=0
    _
  %s6 = ssub.s32 1, %s4
  %s7 = scalar_select 0, %s6, %s4
  // Predicated region
  $region2: #{cnn_forward.5} parent=0 // pred_check
    _
  $region3: #{cnn_forward.5} parent=0 // pred_check_branch
    %9 = sbr.rel (0) target = $region5
  $region4: #{cnn_forward.5} parent=0 // pred_region
    _
  $region5: #{cnn_forward.5} parent=0 // pred_fallthru
    _
  // Predicated region
  $region6: #{cnn_forward.5} parent=0 // pred_check
    _
  $region7: #{cnn_forward.5} parent=0 // pred_check_branch
    %11 = sbr.rel (0) target = $region9
  $region8: #{cnn_forward.5} parent=0 // pred_region
    _
  $region9: #{cnn_forward.5} parent=0 // pred_fallthru
    _
  // Predicated region
  $region10: #{cnn_forward.5} parent=0 // pred_check
    _
  $region11: #{cnn_forward.5} parent=0 // pred_check_branch
    %13 = sbr.rel (0) target = $region13
  $region12: #{cnn_forward.5} parent=0 // pred_region
    _
  $region13: #{cnn_forward.5} parent=0 // pred_fallthru
    _
  %v15 = vld [vmem:[%s0] sm:$0xff]
  %v16 = vld [vmem:[%s0 + $0x8] sm:$0xff]
  %v17 = vld [vmem:[%s0 + $0x10] sm:$0xf]
  %v18 = vld [vmem:[%s0 + $0x14] sm:$0xff]
  %v19 = vld [vmem:[%s0 + $0x1c] sm:$0xff]
  %v20 = vld [vmem:[%s0 + $0x24] sm:$0xf]
  %v21 = vld [vmem:[%s0 + $0x28] sm:$0xff]
  %v22 = vld [vmem:[%s0 + $0x30] sm:$0xff]
  %v23 = vld [vmem:[%s0 + $0x38] sm:$0xf]
  %v24 = vld [vmem:[%s0 + $0x3c] sm:$0xff]
  %v25 = vld [vmem:[%s0 + $0x44] sm:$0xff]
  %v26 = vld [vmem:[%s0 + $0x4c] sm:$0xf]
  %v27 = vld [vmem:[%s0 + $0x50] sm:$0xff]
  %v28 = vld [vmem:[%s0 + $0x58] sm:$0xff]
  %v29 = vld [vmem:[%s0 + $0x60] sm:$0xf]
  %v30 = vld [vmem:[%s0 + $0x64] sm:$0xff]
  %v31 = vld [vmem:[%s0 + $0x6c] sm:$0xff]
  %v32 = vld [vmem:[%s0 + $0x74] sm:$0xf]
  %v33 = vld [vmem:[%s0 + $0x78] sm:$0xff]
  %v34 = vld [vmem:[%s0 + $0x80] sm:$0xff]
  %v35 = vld [vmem:[%s0 + $0x88] sm:$0xf]
  %v36 = vld [vmem:[%s0 + $0x8c] sm:$0xff]
  %v37 = vld [vmem:[%s0 + $0x94] sm:$0xff]
  %v38 = vld [vmem:[%s0 + $0x9c] sm:$0xf]
  %v39 = vld [vmem:[%s1] sm:$0xf]
  %v40 = vld [vmem:[%s1 + $0x4] sm:$0xf]
  %v41 = vld [vmem:[%s1 + $0x8] sm:$0xf]
  %v42 = vld [vmem:[%s1 + $0xc] sm:$0xf]
  %v43 = vld [vmem:[%s1 + $0x10] sm:$0xf]
  %v44 = vld [vmem:[%s1 + $0x14] sm:$0xf]
  %v45 = vld [vmem:[%s1 + $0x18] sm:$0xf]
  %v46 = vld [vmem:[%s1 + $0x1c] sm:$0xf]
  %v47 = vld [vmem:[%s1 + $0x20] sm:$0xf]
  %v48 = vld [vmem:[%s1 + $0x24] sm:$0xf]
  %v49 = vld [vmem:[%s1 + $0x28] sm:$0xf]
  %v50 = vld [vmem:[%s1 + $0x2c] sm:$0xf]
  %v51 = vld [vmem:[%s1 + $0x30] sm:$0xf]
  %v52 = vld [vmem:[%s1 + $0x34] sm:$0xf]
  %v53 = vld [vmem:[%s1 + $0x38] sm:$0xf]
  %v54 = vld [vmem:[%s1 + $0x3c] sm:$0xf]
  %v55 = vld [vmem:[%s1 + $0x40] sm:$0xf]
  %v56 = vld [vmem:[%s1 + $0x44] sm:$0xf]
  %v57 = vld [vmem:[%s1 + $0x48] sm:$0xf]
  %v58 = vld [vmem:[%s1 + $0x4c] sm:$0xf]
  %v59 = vld [vmem:[%s1 + $0x50] sm:$0xf]
  %v60 = vld [vmem:[%s1 + $0x54] sm:$0xf]
  %v61 = vld [vmem:[%s1 + $0x58] sm:$0xf]
  %v62 = vld [vmem:[%s1 + $0x5c] sm:$0xf]
  %v63 = vld [vmem:[%s1 + $0x60] sm:$0xf]
  %v64 = vld [vmem:[%s1 + $0x64] sm:$0xf]
  %v65 = vld [vmem:[%s1 + $0x68] sm:$0xf]
  %v66 = vld [vmem:[%s1 + $0x6c] sm:$0xf]
  %v67 = vld [vmem:[%s1 + $0x70] sm:$0xf]
  %v68 = vld [vmem:[%s1 + $0x74] sm:$0xf]
  %v69 = vld [vmem:[%s1 + $0x78] sm:$0xf]
  %v70 = vld [vmem:[%s1 + $0x7c] sm:$0xf]
  %v71 = vld [vmem:[%s1 + $0x80] sm:$0xf]
  %v72 = vld [vmem:[%s1 + $0x84] sm:$0xf]
  %v73 = vld [vmem:[%s1 + $0x88] sm:$0xf]
  %v74 = vld [vmem:[%s1 + $0x8c] sm:$0xf]
  %v75 = vld [vmem:[%s1 + $0x90] sm:$0xf]
  %v76 = vld [vmem:[%s1 + $0x94] sm:$0xf]
  %v77 = vld [vmem:[%s1 + $0x98] sm:$0xf]
  %v78 = vld [vmem:[%s1 + $0x9c] sm:$0xf]
  %v79 = vld [vmem:[%s1 + $0xa0] sm:$0xf]
  %v80 = vld [vmem:[%s1 + $0xa4] sm:$0xf]
  %v81 = vld [vmem:[%s1 + $0xa8] sm:$0xf]
  %v82 = vld [vmem:[%s1 + $0xac] sm:$0xf]
  %v83 = vld [vmem:[%s1 + $0xb0] sm:$0xf]
  %v84 = vld [vmem:[%s1 + $0xb4] sm:$0xf]
  %v85 = vld [vmem:[%s1 + $0xb8] sm:$0xf]
  %v86 = vld [vmem:[%s1 + $0xbc] sm:$0xf]
  %v87 = vld [vmem:[%s1 + $0xc0] sm:$0xf]
  %v88 = vld [vmem:[%s1 + $0xc4] sm:$0xf]
  %v89 = vld [vmem:[%s1 + $0xc8] sm:$0xf]
  %v90 = vld [vmem:[%s1 + $0xcc] sm:$0xf]
  %v91 = vld [vmem:[%s1 + $0xd0] sm:$0xf]
  %v92 = vld [vmem:[%s1 + $0xd4] sm:$0xf]
  %v93 = vld [vmem:[%s1 + $0xd8] sm:$0xf]
  %v94 = vld [vmem:[%s1 + $0xdc] sm:$0xf]
  %v95 = vld [vmem:[%s1 + $0xe0] sm:$0xf]
  %v96 = vld [vmem:[%s1 + $0xe4] sm:$0xf]
  %v97 = vld [vmem:[%s1 + $0xe8] sm:$0xf]
  %v98 = vld [vmem:[%s1 + $0xec] sm:$0xf]
  %v99 = vld [vmem:[%s1 + $0xf0] sm:$0xf]
  %v100 = vld [vmem:[%s1 + $0xf4] sm:$0xf]
  %v101 = vld [vmem:[%s1 + $0xf8] sm:$0xf]
  %v102 = vld [vmem:[%s1 + $0xfc] sm:$0xf]
  %v103 = vld [vmem:[%s1 + $0x100] sm:$0xf]
  %v104 = vld [vmem:[%s1 + $0x104] sm:$0xf]
  %v105 = vld [vmem:[%s1 + $0x108] sm:$0xf]
  %v106 = vld [vmem:[%s1 + $0x10c] sm:$0xf]
  %v107 = vld [vmem:[%s1 + $0x110] sm:$0xf]
  %v108 = vld [vmem:[%s1 + $0x114] sm:$0xf]
  %v109 = vld [vmem:[%s1 + $0x118] sm:$0xf]
  %v110 = vld [vmem:[%s1 + $0x11c] sm:$0xf]
  %v135 = vunpack.c.l.b16 %v15
  %v136 = vunpack.c.h.b16 %v15
  %v137 = vunpack.c.l.b16 %v16
  %v138 = vunpack.c.h.b16 %v16
  %v139 = vunpack.c.l.b16 %v17
  %v140 = vunpack.c.l.b16 %v18
  %v141 = vunpack.c.h.b16 %v18
  %v142 = vunpack.c.l.b16 %v19
  %v143 = vunpack.c.h.b16 %v19
  %v144 = vunpack.c.l.b16 %v20
  %v145 = vunpack.c.l.b16 %v21
  %v146 = vunpack.c.h.b16 %v21
  %v147 = vunpack.c.l.b16 %v22
  %v148 = vunpack.c.h.b16 %v22
  %v149 = vunpack.c.l.b16 %v23
  %v150 = vunpack.c.l.b16 %v24
  %v151 = vunpack.c.h.b16 %v24
  %v152 = vunpack.c.l.b16 %v25
  %v153 = vunpack.c.h.b16 %v25
  %v154 = vunpack.c.l.b16 %v26
  %v155 = vunpack.c.l.b16 %v27
  %v156 = vunpack.c.h.b16 %v27
  %v157 = vunpack.c.l.b16 %v28
  %v158 = vunpack.c.h.b16 %v28
  %v159 = vunpack.c.l.b16 %v29
  %v160 = vunpack.c.l.b16 %v30
  %v161 = vunpack.c.h.b16 %v30
  %v162 = vunpack.c.l.b16 %v31
  %v163 = vunpack.c.h.b16 %v31
  %v164 = vunpack.c.l.b16 %v32
  %v165 = vunpack.c.l.b16 %v33
  %v166 = vunpack.c.h.b16 %v33
  %v167 = vunpack.c.l.b16 %v34
  %v168 = vunpack.c.h.b16 %v34
  %v169 = vunpack.c.l.b16 %v35
  %v170 = vunpack.c.l.b16 %v36
  %v171 = vunpack.c.h.b16 %v36
  %v172 = vunpack.c.l.b16 %v37
  %v173 = vunpack.c.h.b16 %v37
  %v174 = vunpack.c.l.b16 %v38
  %v175 = vpack.c.b16 %v140, %v135
  %v176 = vpack.c.b16 %v141, %v136
  %v177 = vpack.c.b16 %v142, %v137
  %v178 = vpack.c.b16 %v143, %v138
  %v179 = vpack.c.b16 %v144, %v139
  %v180 = vpack.c.b16 %v150, %v145
  %v181 = vpack.c.b16 %v151, %v146
  %v182 = vpack.c.b16 %v152, %v147
  %v183 = vpack.c.b16 %v153, %v148
  %v184 = vpack.c.b16 %v154, %v149
  %v185 = vpack.c.b16 %v160, %v155
  %v186 = vpack.c.b16 %v161, %v156
  %v187 = vpack.c.b16 %v162, %v157
  %v188 = vpack.c.b16 %v163, %v158
  %v189 = vpack.c.b16 %v164, %v159
  %v190 = vpack.c.b16 %v170, %v165
  %v191 = vpack.c.b16 %v171, %v166
  %v192 = vpack.c.b16 %v172, %v167
  %v193 = vpack.c.b16 %v173, %v168
  %v194 = vpack.c.b16 %v174, %v169
  %v283 = vunpack.c.l.b16 %v39
  %v284 = vunpack.c.l.b16 %v40
  %v285 = vunpack.c.l.b16 %v41
  %v286 = vunpack.c.l.b16 %v42
  %v287 = vunpack.c.l.b16 %v43
  %v288 = vunpack.c.l.b16 %v44
  %v289 = vunpack.c.l.b16 %v45
  %v290 = vunpack.c.l.b16 %v46
  %v291 = vunpack.c.l.b16 %v47
  %v292 = vunpack.c.l.b16 %v48
  %v293 = vunpack.c.l.b16 %v49
  %v294 = vunpack.c.l.b16 %v50
  %v295 = vunpack.c.l.b16 %v51
  %v296 = vunpack.c.l.b16 %v52
  %v297 = vunpack.c.l.b16 %v53
  %v298 = vunpack.c.l.b16 %v54
  %v299 = vunpack.c.l.b16 %v55
  %v300 = vunpack.c.l.b16 %v56
  %v301 = vunpack.c.l.b16 %v57
  %v302 = vunpack.c.l.b16 %v58
  %v303 = vunpack.c.l.b16 %v59
  %v304 = vunpack.c.l.b16 %v60
  %v305 = vunpack.c.l.b16 %v61
  %v306 = vunpack.c.l.b16 %v62
  %v307 = vunpack.c.l.b16 %v63
  %v308 = vunpack.c.l.b16 %v64
  %v309 = vunpack.c.l.b16 %v65
  %v310 = vunpack.c.l.b16 %v66
  %v311 = vunpack.c.l.b16 %v67
  %v312 = vunpack.c.l.b16 %v68
  %v313 = vunpack.c.l.b16 %v69
  %v314 = vunpack.c.l.b16 %v70
  %v315 = vunpack.c.l.b16 %v71
  %v316 = vunpack.c.l.b16 %v72
  %v317 = vunpack.c.l.b16 %v73
  %v318 = vunpack.c.l.b16 %v74
  %v319 = vunpack.c.l.b16 %v75
  %v320 = vunpack.c.l.b16 %v76
  %v321 = vunpack.c.l.b16 %v77
  %v322 = vunpack.c.l.b16 %v78
  %v323 = vunpack.c.l.b16 %v79
  %v324 = vunpack.c.l.b16 %v80
  %v325 = vunpack.c.l.b16 %v81
  %v326 = vunpack.c.l.b16 %v82
  %v327 = vunpack.c.l.b16 %v83
  %v328 = vunpack.c.l.b16 %v84
  %v329 = vunpack.c.l.b16 %v85
  %v330 = vunpack.c.l.b16 %v86
  %v331 = vunpack.c.l.b16 %v87
  %v332 = vunpack.c.l.b16 %v88
  %v333 = vunpack.c.l.b16 %v89
  %v334 = vunpack.c.l.b16 %v90
  %v335 = vunpack.c.l.b16 %v91
  %v336 = vunpack.c.l.b16 %v92
  %v337 = vunpack.c.l.b16 %v93
  %v338 = vunpack.c.l.b16 %v94
  %v339 = vunpack.c.l.b16 %v95
  %v340 = vunpack.c.l.b16 %v96
  %v341 = vunpack.c.l.b16 %v97
  %v342 = vunpack.c.l.b16 %v98
  %v343 = vunpack.c.l.b16 %v99
  %v344 = vunpack.c.l.b16 %v100
  %v345 = vunpack.c.l.b16 %v101
  %v346 = vunpack.c.l.b16 %v102
  %v347 = vunpack.c.l.b16 %v103
  %v348 = vunpack.c.l.b16 %v104
  %v349 = vunpack.c.l.b16 %v105
  %v350 = vunpack.c.l.b16 %v106
  %v351 = vunpack.c.l.b16 %v107
  %v352 = vunpack.c.l.b16 %v108
  %v353 = vunpack.c.l.b16 %v109
  %v354 = vunpack.c.l.b16 %v110
  %v355 = vpack.c.b16 %v284, %v283
  %v356 = vpack.c.b16 %v286, %v285
  %v357 = vpack.c.b16 %v288, %v287
  %v358 = vpack.c.b16 %v290, %v289
  %v359 = vpack.c.b16 %v292, %v291
  %v360 = vpack.c.b16 %v294, %v293
  %v361 = vpack.c.b16 %v296, %v295
  %v362 = vpack.c.b16 %v298, %v297
  %v363 = vpack.c.b16 %v300, %v299
  %v364 = vpack.c.b16 %v302, %v301
  %v365 = vpack.c.b16 %v304, %v303
  %v366 = vpack.c.b16 %v306, %v305
  %v367 = vpack.c.b16 %v308, %v307
  %v368 = vpack.c.b16 %v310, %v309
  %v369 = vpack.c.b16 %v312, %v311
  %v370 = vpack.c.b16 %v314, %v313
  %v371 = vpack.c.b16 %v316, %v315
  %v372 = vpack.c.b16 %v318, %v317
  %v373 = vpack.c.b16 %v320, %v319
  %v374 = vpack.c.b16 %v322, %v321
  %v375 = vpack.c.b16 %v324, %v323
  %v376 = vpack.c.b16 %v326, %v325
  %v377 = vpack.c.b16 %v328, %v327
  %v378 = vpack.c.b16 %v330, %v329
  %v379 = vpack.c.b16 %v332, %v331
  %v380 = vpack.c.b16 %v334, %v333
  %v381 = vpack.c.b16 %v336, %v335
  %v382 = vpack.c.b16 %v338, %v337
  %v383 = vpack.c.b16 %v340, %v339
  %v384 = vpack.c.b16 %v342, %v341
  %v385 = vpack.c.b16 %v344, %v343
  %v386 = vpack.c.b16 %v346, %v345
  %v387 = vpack.c.b16 %v348, %v347
  %v388 = vpack.c.b16 %v350, %v349
  %v389 = vpack.c.b16 %v352, %v351
  %v390 = vpack.c.b16 %v354, %v353
  %vm427 = vcmask 523264
  %v429 = vsel %vm427, %v179, 0
  %v432 = vsel %vm427, %v184, 0
  %v435 = vsel %vm427, %v189, 0
  %v438 = vsel %vm427, %v194, 0
  %440 = vmatprep.subr.bf16.mxu0 0
  %441 = vmatpush1.bf16.msra.mxu0 %v355
  %442 = vmatprep.subr.bf16.mxu0 0
  %443 = vmatpush1.bf16.msra.mxu0 %v356
  %444 = vmatprep.subr.bf16.mxu0 0
  %445 = vmatpush1.bf16.msra.mxu0 %v357
  %446 = vmatprep.subr.bf16.mxu0 0
  %447 = vmatpush1.bf16.msra.mxu0 %v358
  %448 = vmatprep.subr.bf16.mxu0 0
  %449 = vmatpush1.bf16.msra.mxu0 %v359
  %450 = vmatprep.subr.bf16.mxu0 0
  %451 = vmatpush1.bf16.msra.mxu0 %v360
  %452 = vmatprep.subr.bf16.mxu0 0
  %453 = vmatpush1.bf16.msra.mxu0 %v361
  %454 = vmatprep.subr.bf16.mxu0 0
  %455 = vmatpush1.bf16.msra.mxu0 %v362
  %456 = vmatprep.subr.bf16.mxu0 0
  %457 = vmatpush1.bf16.msra.mxu0 %v363
  %458 = vmatprep.subr.bf16.mxu0 0
  %459 = vmatpush1.bf16.msra.mxu0 %v364
  %460 = vmatprep.subr.bf16.mxu0 0
  %461 = vmatpush1.bf16.msra.mxu0 %v365
  %462 = vmatprep.subr.bf16.mxu0 0
  %463 = vmatpush1.bf16.msra.mxu0 %v366
  %464 = vmatprep.subr.bf16.mxu0 0
  %465 = vmatpush1.bf16.msra.mxu0 %v367
  %466 = vmatprep.subr.bf16.mxu0 0
  %467 = vmatpush1.bf16.msra.mxu0 %v368
  %468 = vmatprep.subr.bf16.mxu0 0
  %469 = vmatpush1.bf16.msra.mxu0 %v369
  %470 = vmatprep.subr.bf16.mxu0 0
  %471 = vmatpush1.bf16.msra.mxu0 %v370
  %472 = vmatprep.mubr.bf16.mxu0 %v176
  %473 = vmatmul.mubr.bf16.gmra.mrb[0].mxu0 %v175
  %v474 = vpop.f32.mrb[0].mxu0
  %v475 = vadd.f32 0.0, %v474
  %v476 = vpop.f32.mrb[0].mxu0
  %v477 = vpop.f32.mrb[0].mxu0
  %v478 = vadd.f32 0.0, %v477
  %v479 = vpop.f32.mrb[0].mxu0
  %480 = vmatprep.mubr.bf16.mxu0 %v181
  %481 = vmatmul.mubr.bf16.gmra.mrb[0].mxu0 %v180
  %v482 = vpop.f32.mrb[0].mxu0
  %v483 = vadd.f32 0.0, %v482
  %v484 = vpop.f32.mrb[0].mxu0
  %v485 = vpop.f32.mrb[0].mxu0
  %v486 = vadd.f32 0.0, %v485
  %v487 = vpop.f32.mrb[0].mxu0
  %488 = vmatprep.mubr.bf16.mxu0 %v186
  %489 = vmatmul.mubr.bf16.gmra.mrb[0].mxu0 %v185
  %v490 = vpop.f32.mrb[0].mxu0
  %v491 = vadd.f32 0.0, %v490
  %v492 = vpop.f32.mrb[0].mxu0
  %v493 = vpop.f32.mrb[0].mxu0
  %v494 = vadd.f32 0.0, %v493
  %v495 = vpop.f32.mrb[0].mxu0
  %496 = vmatprep.mubr.bf16.mxu0 %v191
  %497 = vmatmul.mubr.bf16.gmra.mrb[0].mxu0 %v190
  %v498 = vpop.f32.mrb[0].mxu0
  %v499 = vadd.f32 0.0, %v498
  %v500 = vpop.f32.mrb[0].mxu0
  %v501 = vpop.f32.mrb[0].mxu0
  %v502 = vadd.f32 0.0, %v501
  %v503 = vpop.f32.mrb[0].mxu0
  %504 = vdwg.mxu0
  %505 = vmatprep.subr.bf16.mxu0 0
  %506 = vmatpush1.bf16.msra.mxu0 %v371
  %507 = vmatprep.subr.bf16.mxu0 0
  %508 = vmatpush1.bf16.msra.mxu0 %v372
  %509 = vmatprep.subr.bf16.mxu0 0
  %510 = vmatpush1.bf16.msra.mxu0 %v373
  %511 = vmatprep.subr.bf16.mxu0 0
  %512 = vmatpush1.bf16.msra.mxu0 %v374
  %513 = vmatprep.subr.bf16.mxu0 0
  %514 = vmatpush1.bf16.msra.mxu0 %v375
  %515 = vmatprep.subr.bf16.mxu0 0
  %516 = vmatpush1.bf16.msra.mxu0 %v376
  %517 = vmatprep.subr.bf16.mxu0 0
  %518 = vmatpush1.bf16.msra.mxu0 %v377
  %519 = vmatprep.subr.bf16.mxu0 0
  %520 = vmatpush1.bf16.msra.mxu0 %v378
  %521 = vmatprep.subr.bf16.mxu0 0
  %522 = vmatpush1.bf16.msra.mxu0 %v379
  %523 = vmatprep.subr.bf16.mxu0 0
  %524 = vmatpush1.bf16.msra.mxu0 %v380
  %525 = vmatprep.subr.bf16.mxu0 0
  %526 = vmatpush1.bf16.msra.mxu0 %v381
  %527 = vmatprep.subr.bf16.mxu0 0
  %528 = vmatpush1.bf16.msra.mxu0 %v382
  %529 = vmatprep.subr.bf16.mxu0 0
  %530 = vmatpush1.bf16.msra.mxu0 %v383
  %531 = vmatprep.subr.bf16.mxu0 0
  %532 = vmatpush1.bf16.msra.mxu0 %v384
  %533 = vmatprep.subr.bf16.mxu0 0
  %534 = vmatpush1.bf16.msra.mxu0 %v385
  %535 = vmatprep.subr.bf16.mxu0 0
  %536 = vmatpush1.bf16.msra.mxu0 %v386
  %537 = vmatprep.mubr.bf16.mxu0 %v178
  %538 = vmatmul.mubr.bf16.gmra.mrb[0].mxu0 %v177
  %v539 = vpop.f32.mrb[0].mxu0
  %v540 = vadd.f32 %v475, %v539
  %v541 = vpop.f32.mrb[0].mxu0
  %v542 = vpop.f32.mrb[0].mxu0
  %v543 = vadd.f32 %v478, %v542
  %v544 = vpop.f32.mrb[0].mxu0
  %545 = vmatprep.mubr.bf16.mxu0 %v183
  %546 = vmatmul.mubr.bf16.gmra.mrb[0].mxu0 %v182
  %v547 = vpop.f32.mrb[0].mxu0
  %v548 = vadd.f32 %v483, %v547
  %v549 = vpop.f32.mrb[0].mxu0
  %v550 = vpop.f32.mrb[0].mxu0
  %v551 = vadd.f32 %v486, %v550
  %v552 = vpop.f32.mrb[0].mxu0
  %553 = vmatprep.mubr.bf16.mxu0 %v188
  %554 = vmatmul.mubr.bf16.gmra.mrb[0].mxu0 %v187
  %v555 = vpop.f32.mrb[0].mxu0
  %v556 = vadd.f32 %v491, %v555
  %v557 = vpop.f32.mrb[0].mxu0
  %v558 = vpop.f32.mrb[0].mxu0
  %v559 = vadd.f32 %v494, %v558
  %v560 = vpop.f32.mrb[0].mxu0
  %561 = vmatprep.mubr.bf16.mxu0 %v193
  %562 = vmatmul.mubr.bf16.gmra.mrb[0].mxu0 %v192
  %v563 = vpop.f32.mrb[0].mxu0
  %v564 = vadd.f32 %v499, %v563
  %v565 = vpop.f32.mrb[0].mxu0
  %v566 = vpop.f32.mrb[0].mxu0
  %v567 = vadd.f32 %v502, %v566
  %v568 = vpop.f32.mrb[0].mxu0
  %569 = vdwg.mxu0
  %570 = vmatprep.subr.bf16.mxu0 0
  %571 = vmatpush1.bf16.msra.mxu0 %v387
  %572 = vmatprep.subr.bf16.mxu0 0
  %573 = vmatpush1.bf16.msra.mxu0 %v388
  %574 = vmatprep.subr.bf16.mxu0 0
  %575 = vmatpush1.bf16.msra.mxu0 %v389
  %576 = vmatprep.subr.bf16.mxu0 0
  %577 = vmatpush1.bf16.msra.mxu0 %v390
  %578 = vmatprep.subr.bf16.mxu0 0
  %579 = vmatpush1.bf16.msra.mxu0 0
  %580 = vmatprep.subr.bf16.mxu0 0
  %581 = vmatpush1.bf16.msra.mxu0 0
  %582 = vmatprep.subr.bf16.mxu0 0
  %583 = vmatpush1.bf16.msra.mxu0 0
  %584 = vmatprep.subr.bf16.mxu0 0
  %585 = vmatpush1.bf16.msra.mxu0 0
  %586 = vmatprep.subr.bf16.mxu0 0
  %587 = vmatpush1.bf16.msra.mxu0 0
  %588 = vmatprep.subr.bf16.mxu0 0
  %589 = vmatpush1.bf16.msra.mxu0 0
  %590 = vmatprep.subr.bf16.mxu0 0
  %591 = vmatpush1.bf16.msra.mxu0 0
  %592 = vmatprep.subr.bf16.mxu0 0
  %593 = vmatpush1.bf16.msra.mxu0 0
  %594 = vmatprep.subr.bf16.mxu0 0
  %595 = vmatpush1.bf16.msra.mxu0 0
  %596 = vmatprep.subr.bf16.mxu0 0
  %597 = vmatpush1.bf16.msra.mxu0 0
  %598 = vmatprep.subr.bf16.mxu0 0
  %599 = vmatpush1.bf16.msra.mxu0 0
  %600 = vmatprep.subr.bf16.mxu0 0
  %601 = vmatpush1.bf16.msra.mxu0 0
  %602 = vmatprep.mubr.bf16.mxu0 0
  %603 = vmatmul.mubr.bf16.gmra.mrb[0].mxu0 %v429
  %v604 = vpop.f32.mrb[0].mxu0
  %v605 = vadd.f32 %v540, %v604
  %v606 = vpop.f32.mrb[0].mxu0
  %v607 = vpop.f32.mrb[0].mxu0
  %v608 = vadd.f32 %v543, %v607
  %v609 = vpop.f32.mrb[0].mxu0
  %610 = vmatprep.mubr.bf16.mxu0 0
  %611 = vmatmul.mubr.bf16.gmra.mrb[0].mxu0 %v432
  %v612 = vpop.f32.mrb[0].mxu0
  %v613 = vadd.f32 %v548, %v612
  %v614 = vpop.f32.mrb[0].mxu0
  %v615 = vpop.f32.mrb[0].mxu0
  %v616 = vadd.f32 %v551, %v615
  %v617 = vpop.f32.mrb[0].mxu0
  %618 = vmatprep.mubr.bf16.mxu0 0
  %619 = vmatmul.mubr.bf16.gmra.mrb[0].mxu0 %v435
  %v620 = vpop.f32.mrb[0].mxu0
  %v621 = vadd.f32 %v556, %v620
  %v622 = vpop.f32.mrb[0].mxu0
  %v623 = vpop.f32.mrb[0].mxu0
  %v624 = vadd.f32 %v559, %v623
  %v625 = vpop.f32.mrb[0].mxu0
  %626 = vmatprep.mubr.bf16.mxu0 0
  %627 = vmatmul.mubr.bf16.gmra.mrb[0].mxu0 %v438
  %v628 = vpop.f32.mrb[0].mxu0
  %v629 = vadd.f32 %v564, %v628
  %v630 = vpop.f32.mrb[0].mxu0
  %v631 = vpop.f32.mrb[0].mxu0
  %v632 = vadd.f32 %v567, %v631
  %v633 = vpop.f32.mrb[0].mxu0
  %634 = vdwg.mxu0
  %v635 = vmax.f32 %v605, %v613
  %v636 = vmax.f32 %v608, %v616
  %v637 = vmax.f32 %v621, %v629
  %v638 = vmax.f32 %v624, %v632
  %v639 = vmax.f32 %v635, %v637
  %v640 = vmax.f32 %v636, %v638
  %v641 = vld [vmem:[%s2] sm:$0x1]
  %v643 = vlaneseq
  %v644 = vshrl.u32 %v643, 7
  %v645 = vsub.s32 0, %v644
  %v646 = vrot.slane %v641, %v645
  %v648 = vadd.f32 %v639, %v646
  %v649 = vadd.f32 %v640, %v646
  %v650 = vmax.f32 %v648, 0.0
  %v651 = vmax.f32 %v649, 0.0
  %652 = vst [vmem:[%s3] sm:$0xff] %v650
  %653 = vst [vmem:[%s3 + $0x8] sm:$0xff] %v651
  // Predicated region
  $region14: #{cnn_forward.5} parent=0 // pred_check
    _
  $region15: #{cnn_forward.5} parent=0 // pred_check_branch
    %655 = sbr.rel (0) target = $region17
  $region16: #{cnn_forward.5} parent=0 // pred_region
    _
  $region17: #{cnn_forward.5} parent=0 // pred_fallthru
    _
  // Predicated region
  $region18: #{cnn_forward.5} parent=0 // pred_check
    _
  $region19: #{cnn_forward.5} parent=0 // pred_check_branch
    %657 = sbr.rel (0) target = $region21
  $region20: #{cnn_forward.5} parent=0 // pred_region
    _
  $region21: #{cnn_forward.5} parent=0 // pred_fallthru
    _

// kernel: cnn_forward.7
$region0: #{cnn_forward.7}
  #allocation0 [shape = 'u32[]', space=smem, size = 0x4, offset = 0x4, fixed_abs, tag = 'smem constant byte address 0x4 - core index']
  #allocation1 [shape = 'u32[144,128]{1,0:T(1,128)}', space=vmem, size = 0x12000, scoped, tag = 'internal scratch']
  %s0 = inlined_call_operand.vmem [shape: bf16[2,512], index: 0, kind: input, shape index: {}]
  %s1 = inlined_call_operand.vmem [shape: bf16[512,128], index: 1, kind: input, shape index: {}]
  %s2 = inlined_call_operand.vmem [shape: f32[1,128], index: 2, kind: input, shape index: {}]
  %s3 = inlined_call_operand.vmem [shape: bf16[128,128], index: 3, kind: input, shape index: {}]
  %s4 = inlined_call_operand.vmem [shape: f32[1,128], index: 4, kind: input, shape index: {}]
  %s5 = inlined_call_operand.hbm [shape: f32[2,128], index: 5, kind: output, shape index: {}]
  %s6 = sld [smem:[#allocation0]]
  $region30: #{cnn_forward.7} parent=0
    _
  %s8 = ssub.s32 1, %s6
  %s9 = scalar_select 0, %s8, %s6
  $region1: #{cnn_forward.7} parent=0
    #allocation2 [shape = 'u8[1024]{0}', space=vmem, size = 0x400, scoped, tag = 'output window, operand 0, single buffered']
    #allocation3 [shape = 's32[1]{0}', space=sflag, size = 0x4, scoped, tag = 'scoped memory for cnn_forward.7']
    %10 = vsyncpa [#allocation3], 0
    // Predicated region
    $region2: #{cnn_forward.7} parent=1 // pred_check
      _
    $region3: #{cnn_forward.7} parent=1 // pred_check_branch
      %12 = sbr.rel (0) target = $region5
    $region4: #{cnn_forward.7} parent=1 // pred_region
      _
    $region5: #{cnn_forward.7} parent=1 // pred_fallthru
      _
    // Predicated region
    $region6: #{cnn_forward.7} parent=1 // pred_check
      _
    $region7: #{cnn_forward.7} parent=1 // pred_check_branch
      %14 = sbr.rel (0) target = $region9
    $region8: #{cnn_forward.7} parent=1 // pred_region
      _
    $region9: #{cnn_forward.7} parent=1 // pred_fallthru
      _
    // Predicated region
    $region10: #{cnn_forward.7} parent=1 // pred_check
      _
    $region11: #{cnn_forward.7} parent=1 // pred_check_branch
      %16 = sbr.rel (0) target = $region13
    $region12: #{cnn_forward.7} parent=1 // pred_region
      _
    $region13: #{cnn_forward.7} parent=1 // pred_fallthru
      _
    // Predicated region
    $region14: #{cnn_forward.7} parent=1 // pred_check
      _
    $region15: #{cnn_forward.7} parent=1 // pred_check_branch
      %18 = sbr.rel (0) target = $region17
    $region16: #{cnn_forward.7} parent=1 // pred_region
      _
    $region17: #{cnn_forward.7} parent=1 // pred_fallthru
      _
    // Predicated region
    $region18: #{cnn_forward.7} parent=1 // pred_check
      _
    $region19: #{cnn_forward.7} parent=1 // pred_check_branch
      %20 = sbr.rel (0) target = $region21
    $region20: #{cnn_forward.7} parent=1 // pred_region
      _
    $region21: #{cnn_forward.7} parent=1 // pred_fallthru
      _
    %v22 = vld [vmem:[%s0] sm:$0xf]
    %v23 = vld [vmem:[%s1] sm:$0xf]
    %v24 = vld [vmem:[%s1 + $0x4] sm:$0xf]
    %v25 = vld [vmem:[%s1 + $0x8] sm:$0xf]
    %v26 = vld [vmem:[%s1 + $0xc] sm:$0xf]
    %v27 = vld [vmem:[%s1 + $0x10] sm:$0xf]
    %v28 = vld [vmem:[%s1 + $0x14] sm:$0xf]
    %v29 = vld [vmem:[%s1 + $0x18] sm:$0xf]
    %v30 = vld [vmem:[%s1 + $0x1c] sm:$0xf]
    %v31 = vld [vmem:[%s1 + $0x20] sm:$0xf]
    %v32 = vld [vmem:[%s1 + $0x24] sm:$0xf]
    %v33 = vld [vmem:[%s1 + $0x28] sm:$0xf]
    %v34 = vld [vmem:[%s1 + $0x2c] sm:$0xf]
    %v35 = vld [vmem:[%s1 + $0x30] sm:$0xf]
    %v36 = vld [vmem:[%s1 + $0x34] sm:$0xf]
    %v37 = vld [vmem:[%s1 + $0x38] sm:$0xf]
    %v38 = vld [vmem:[%s1 + $0x3c] sm:$0xf]
    %v39 = vld [vmem:[%s1 + $0x40] sm:$0xf]
    %v40 = vld [vmem:[%s1 + $0x44] sm:$0xf]
    %v41 = vld [vmem:[%s1 + $0x48] sm:$0xf]
    %v42 = vld [vmem:[%s1 + $0x4c] sm:$0xf]
    %v43 = vld [vmem:[%s1 + $0x50] sm:$0xf]
    %v44 = vld [vmem:[%s1 + $0x54] sm:$0xf]
    %v45 = vld [vmem:[%s1 + $0x58] sm:$0xf]
    %v46 = vld [vmem:[%s1 + $0x5c] sm:$0xf]
    %v47 = vld [vmem:[%s1 + $0x60] sm:$0xf]
    %v48 = vld [vmem:[%s1 + $0x64] sm:$0xf]
    %v49 = vld [vmem:[%s1 + $0x68] sm:$0xf]
    %v50 = vld [vmem:[%s1 + $0x6c] sm:$0xf]
    %v51 = vld [vmem:[%s1 + $0x70] sm:$0xf]
    %v52 = vld [vmem:[%s1 + $0x74] sm:$0xf]
    %v53 = vld [vmem:[%s1 + $0x78] sm:$0xf]
    %v54 = vld [vmem:[%s1 + $0x7c] sm:$0xf]
    %v55 = vld [vmem:[%s1 + $0x80] sm:$0xf]
    %v56 = vld [vmem:[%s1 + $0x84] sm:$0xf]
    %v57 = vld [vmem:[%s1 + $0x88] sm:$0xf]
    %v58 = vld [vmem:[%s1 + $0x8c] sm:$0xf]
    %v59 = vld [vmem:[%s1 + $0x90] sm:$0xf]
    %v60 = vld [vmem:[%s1 + $0x94] sm:$0xf]
    %v61 = vld [vmem:[%s1 + $0x98] sm:$0xf]
    %v62 = vld [vmem:[%s1 + $0x9c] sm:$0xf]
    %v63 = vld [vmem:[%s1 + $0xa0] sm:$0xf]
    %v64 = vld [vmem:[%s1 + $0xa4] sm:$0xf]
    %v65 = vld [vmem:[%s1 + $0xa8] sm:$0xf]
    %v66 = vld [vmem:[%s1 + $0xac] sm:$0xf]
    %v67 = vld [vmem:[%s1 + $0xb0] sm:$0xf]
    %v68 = vld [vmem:[%s1 + $0xb4] sm:$0xf]
    %v69 = vld [vmem:[%s1 + $0xb8] sm:$0xf]
    %v70 = vld [vmem:[%s1 + $0xbc] sm:$0xf]
    %v71 = vld [vmem:[%s1 + $0xc0] sm:$0xf]
    %v72 = vld [vmem:[%s1 + $0xc4] sm:$0xf]
    %v73 = vld [vmem:[%s1 + $0xc8] sm:$0xf]
    %v74 = vld [vmem:[%s1 + $0xcc] sm:$0xf]
    %v75 = vld [vmem:[%s1 + $0xd0] sm:$0xf]
    %v76 = vld [vmem:[%s1 + $0xd4] sm:$0xf]
    %v77 = vld [vmem:[%s1 + $0xd8] sm:$0xf]
    %v78 = vld [vmem:[%s1 + $0xdc] sm:$0xf]
    %v79 = vld [vmem:[%s1 + $0xe0] sm:$0xf]
    %v80 = vld [vmem:[%s1 + $0xe4] sm:$0xf]
    %v81 = vld [vmem:[%s1 + $0xe8] sm:$0xf]
    %v82 = vld [vmem:[%s1 + $0xec] sm:$0xf]
    %v83 = vld [vmem:[%s1 + $0xf0] sm:$0xf]
    %v84 = vld [vmem:[%s1 + $0xf4] sm:$0xf]
    %v85 = vld [vmem:[%s1 + $0xf8] sm:$0xf]
    %v86 = vld [vmem:[%s1 + $0xfc] sm:$0xf]
    %v87 = vld [vmem:[%s2] sm:$0x1]
    %v89 = vlaneseq
    %v90 = vshrl.u32 %v89, 7
    %v91 = vsub.s32 0, %v90
    %v92 = vrot.slane %v87, %v91
    %v96 = vunpack.c.l.s4 1966171168
    %v97 = vunpack.c.0.s8 %v96
    %v98 = vlaneseq
    %v99 = vshrl.u32 %v98, 7
    %v100 = vsub.s32 %v97, %v99
    %v101 = vrot.slane %v22, %v100
    %v102 = vcombine.high %v101, %v101
    %v104 = vunpack.c.l.s4 1966171168
    %v105 = vunpack.c.0.s8 %v104
    %v106 = vlaneseq
    %v107 = vshrl.u32 %v106, 7
    %v108 = vsub.s32 %v105, %v107
    %v109 = vrot.slane %v101, %v108
    %v111 = vunpack.c.l.s4 1966171168
    %v112 = vunpack.c.0.s8 %v111
    %v113 = vlaneseq
    %v114 = vshrl.u32 %v113, 7
    %v115 = vsub.s32 %v112, %v114
    %v116 = vrot.slane %v102, %v115
    %v117 = vcombine.high %v109, %v109
    %v118 = vcombine.high %v116, %v116
    %v187 = vunpack.c.l.b16 %v23
    %v188 = vunpack.c.l.b16 %v24
    %v189 = vunpack.c.l.b16 %v25
    %v190 = vunpack.c.l.b16 %v26
    %v191 = vunpack.c.l.b16 %v27
    %v192 = vunpack.c.l.b16 %v28
    %v193 = vunpack.c.l.b16 %v29
    %v194 = vunpack.c.l.b16 %v30
    %v195 = vunpack.c.l.b16 %v31
    %v196 = vunpack.c.l.b16 %v32
    %v197 = vunpack.c.l.b16 %v33
    %v198 = vunpack.c.l.b16 %v34
    %v199 = vunpack.c.l.b16 %v35
    %v200 = vunpack.c.l.b16 %v36
    %v201 = vunpack.c.l.b16 %v37
    %v202 = vunpack.c.l.b16 %v38
    %v203 = vunpack.c.l.b16 %v39
    %v204 = vunpack.c.l.b16 %v40
    %v205 = vunpack.c.l.b16 %v41
    %v206 = vunpack.c.l.b16 %v42
    %v207 = vunpack.c.l.b16 %v43
    %v208 = vunpack.c.l.b16 %v44
    %v209 = vunpack.c.l.b16 %v45
    %v210 = vunpack.c.l.b16 %v46
    %v211 = vunpack.c.l.b16 %v47
    %v212 = vunpack.c.l.b16 %v48
    %v213 = vunpack.c.l.b16 %v49
    %v214 = vunpack.c.l.b16 %v50
    %v215 = vunpack.c.l.b16 %v51
    %v216 = vunpack.c.l.b16 %v52
    %v217 = vunpack.c.l.b16 %v53
    %v218 = vunpack.c.l.b16 %v54
    %v219 = vunpack.c.l.b16 %v55
    %v220 = vunpack.c.l.b16 %v56
    %v221 = vunpack.c.l.b16 %v57
    %v222 = vunpack.c.l.b16 %v58
    %v223 = vunpack.c.l.b16 %v59
    %v224 = vunpack.c.l.b16 %v60
    %v225 = vunpack.c.l.b16 %v61
    %v226 = vunpack.c.l.b16 %v62
    %v227 = vunpack.c.l.b16 %v63
    %v228 = vunpack.c.l.b16 %v64
    %v229 = vunpack.c.l.b16 %v65
    %v230 = vunpack.c.l.b16 %v66
    %v231 = vunpack.c.l.b16 %v67
    %v232 = vunpack.c.l.b16 %v68
    %v233 = vunpack.c.l.b16 %v69
    %v234 = vunpack.c.l.b16 %v70
    %v235 = vunpack.c.l.b16 %v71
    %v236 = vunpack.c.l.b16 %v72
    %v237 = vunpack.c.l.b16 %v73
    %v238 = vunpack.c.l.b16 %v74
    %v239 = vunpack.c.l.b16 %v75
    %v240 = vunpack.c.l.b16 %v76
    %v241 = vunpack.c.l.b16 %v77
    %v242 = vunpack.c.l.b16 %v78
    %v243 = vunpack.c.l.b16 %v79
    %v244 = vunpack.c.l.b16 %v80
    %v245 = vunpack.c.l.b16 %v81
    %v246 = vunpack.c.l.b16 %v82
    %v247 = vunpack.c.l.b16 %v83
    %v248 = vunpack.c.l.b16 %v84
    %v249 = vunpack.c.l.b16 %v85
    %v250 = vunpack.c.l.b16 %v86
    %v251 = vpack.c.b16 %v188, %v187
    %v252 = vpack.c.b16 %v190, %v189
    %v253 = vpack.c.b16 %v192, %v191
    %v254 = vpack.c.b16 %v194, %v193
    %v255 = vpack.c.b16 %v196, %v195
    %v256 = vpack.c.b16 %v198, %v197
    %v257 = vpack.c.b16 %v200, %v199
    %v258 = vpack.c.b16 %v202, %v201
    %v259 = vpack.c.b16 %v204, %v203
    %v260 = vpack.c.b16 %v206, %v205
    %v261 = vpack.c.b16 %v208, %v207
    %v262 = vpack.c.b16 %v210, %v209
    %v263 = vpack.c.b16 %v212, %v211
    %v264 = vpack.c.b16 %v214, %v213
    %v265 = vpack.c.b16 %v216, %v215
    %v266 = vpack.c.b16 %v218, %v217
    %v267 = vpack.c.b16 %v220, %v219
    %v268 = vpack.c.b16 %v222, %v221
    %v269 = vpack.c.b16 %v224, %v223
    %v270 = vpack.c.b16 %v226, %v225
    %v271 = vpack.c.b16 %v228, %v227
    %v272 = vpack.c.b16 %v230, %v229
    %v273 = vpack.c.b16 %v232, %v231
    %v274 = vpack.c.b16 %v234, %v233
    %v275 = vpack.c.b16 %v236, %v235
    %v276 = vpack.c.b16 %v238, %v237
    %v277 = vpack.c.b16 %v240, %v239
    %v278 = vpack.c.b16 %v242, %v241
    %v279 = vpack.c.b16 %v244, %v243
    %v280 = vpack.c.b16 %v246, %v245
    %v281 = vpack.c.b16 %v248, %v247
    %v282 = vpack.c.b16 %v250, %v249
    %315 = vmatprep.subr.bf16.mxu0 0
    %316 = vmatpush1.bf16.msra.mxu0 %v251
    %317 = vmatprep.subr.bf16.mxu0 0
    %318 = vmatpush1.bf16.msra.mxu0 %v252
    %319 = vmatprep.subr.bf16.mxu0 0
    %320 = vmatpush1.bf16.msra.mxu0 %v253
    %321 = vmatprep.subr.bf16.mxu0 0
    %322 = vmatpush1.bf16.msra.mxu0 %v254
    %323 = vmatprep.subr.bf16.mxu0 0
    %324 = vmatpush1.bf16.msra.mxu0 %v255
    %325 = vmatprep.subr.bf16.mxu0 0
    %326 = vmatpush1.bf16.msra.mxu0 %v256
    %327 = vmatprep.subr.bf16.mxu0 0
    %328 = vmatpush1.bf16.msra.mxu0 %v257
    %329 = vmatprep.subr.bf16.mxu0 0
    %330 = vmatpush1.bf16.msra.mxu0 %v258
    %331 = vmatprep.subr.bf16.mxu0 0
    %332 = vmatpush1.bf16.msra.mxu0 %v259
    %333 = vmatprep.subr.bf16.mxu0 0
    %334 = vmatpush1.bf16.msra.mxu0 %v260
    %335 = vmatprep.subr.bf16.mxu0 0
    %336 = vmatpush1.bf16.msra.mxu0 %v261
    %337 = vmatprep.subr.bf16.mxu0 0
    %338 = vmatpush1.bf16.msra.mxu0 %v262
    %339 = vmatprep.subr.bf16.mxu0 0
    %340 = vmatpush1.bf16.msra.mxu0 %v263
    %341 = vmatprep.subr.bf16.mxu0 0
    %342 = vmatpush1.bf16.msra.mxu0 %v264
    %343 = vmatprep.subr.bf16.mxu0 0
    %344 = vmatpush1.bf16.msra.mxu0 %v265
    %345 = vmatprep.subr.bf16.mxu0 0
    %346 = vmatpush1.bf16.msra.mxu0 %v266
    %347 = vmatprep.mubr.bf16.mxu0 %v116
    %348 = vmatmul.mubr.bf16.gmra.mrb[0].mxu0 %v109
    %v349 = vpop.f32.mrb[0].mxu0
    %v350 = vadd.f32 %v92, %v349
    %v351 = vpop.f32.mrb[0].mxu0
    %v352 = vpop.f32.mrb[0].mxu0
    %v353 = vpop.f32.mrb[0].mxu0
    %354 = vdwg.mxu0
    %355 = vmatprep.subr.bf16.mxu0 0
    %356 = vmatpush1.bf16.msra.mxu0 %v267
    %357 = vmatprep.subr.bf16.mxu0 0
    %358 = vmatpush1.bf16.msra.mxu0 %v268
    %359 = vmatprep.subr.bf16.mxu0 0
    %360 = vmatpush1.bf16.msra.mxu0 %v269
    %361 = vmatprep.subr.bf16.mxu0 0
    %362 = vmatpush1.bf16.msra.mxu0 %v270
    %363 = vmatprep.subr.bf16.mxu0 0
    %364 = vmatpush1.bf16.msra.mxu0 %v271
    %365 = vmatprep.subr.bf16.mxu0 0
    %366 = vmatpush1.bf16.msra.mxu0 %v272
    %367 = vmatprep.subr.bf16.mxu0 0
    %368 = vmatpush1.bf16.msra.mxu0 %v273
    %369 = vmatprep.subr.bf16.mxu0 0
    %370 = vmatpush1.bf16.msra.mxu0 %v274
    %371 = vmatprep.subr.bf16.mxu0 0
    %372 = vmatpush1.bf16.msra.mxu0 %v275
    %373 = vmatprep.subr.bf16.mxu0 0
    %374 = vmatpush1.bf16.msra.mxu0 %v276
    %375 = vmatprep.subr.bf16.mxu0 0
    %376 = vmatpush1.bf16.msra.mxu0 %v277
    %377 = vmatprep.subr.bf16.mxu0 0
    %378 = vmatpush1.bf16.msra.mxu0 %v278
    %379 = vmatprep.subr.bf16.mxu0 0
    %380 = vmatpush1.bf16.msra.mxu0 %v279
    %381 = vmatprep.subr.bf16.mxu0 0
    %382 = vmatpush1.bf16.msra.mxu0 %v280
    %383 = vmatprep.subr.bf16.mxu0 0
    %384 = vmatpush1.bf16.msra.mxu0 %v281
    %385 = vmatprep.subr.bf16.mxu0 0
    %386 = vmatpush1.bf16.msra.mxu0 %v282
    %387 = vmatprep.mubr.bf16.mxu0 %v118
    %388 = vmatmul.mubr.bf16.gmra.mrb[0].mxu0 %v117
    %v389 = vpop.f32.mrb[0].mxu0
    %v390 = vadd.f32 %v350, %v389
    %v391 = vpop.f32.mrb[0].mxu0
    %v392 = vpop.f32.mrb[0].mxu0
    %v393 = vpop.f32.mrb[0].mxu0
    %394 = vdwg.mxu0
    %v395 = vmax.f32 %v390, 0.0
    %v396 = vpack.c.bf16 %v395, %v395
    %v397 = vld [vmem:[%s3] sm:$0xf]
    %v398 = vld [vmem:[%s3 + $0x4] sm:$0xf]
    %v399 = vld [vmem:[%s3 + $0x8] sm:$0xf]
    %v400 = vld [vmem:[%s3 + $0xc] sm:$0xf]
    %v401 = vld [vmem:[%s3 + $0x10] sm:$0xf]
    %v402 = vld [vmem:[%s3 + $0x14] sm:$0xf]
    %v403 = vld [vmem:[%s3 + $0x18] sm:$0xf]
    %v404 = vld [vmem:[%s3 + $0x1c] sm:$0xf]
    %v405 = vld [vmem:[%s3 + $0x20] sm:$0xf]
    %v406 = vld [vmem:[%s3 + $0x24] sm:$0xf]
    %v407 = vld [vmem:[%s3 + $0x28] sm:$0xf]
    %v408 = vld [vmem:[%s3 + $0x2c] sm:$0xf]
    %v409 = vld [vmem:[%s3 + $0x30] sm:$0xf]
    %v410 = vld [vmem:[%s3 + $0x34] sm:$0xf]
    %v411 = vld [vmem:[%s3 + $0x38] sm:$0xf]
    %v412 = vld [vmem:[%s3 + $0x3c] sm:$0xf]
    %v413 = vld [vmem:[%s4] sm:$0x1]
    %v415 = vlaneseq
    %v416 = vshrl.u32 %v415, 7
    %v417 = vsub.s32 0, %v416
    %v418 = vrot.slane %v413, %v417
    %v436 = vunpack.c.l.b16 %v397
    %v437 = vunpack.c.l.b16 %v398
    %v438 = vunpack.c.l.b16 %v399
    %v439 = vunpack.c.l.b16 %v400
    %v440 = vunpack.c.l.b16 %v401
    %v441 = vunpack.c.l.b16 %v402
    %v442 = vunpack.c.l.b16 %v403
    %v443 = vunpack.c.l.b16 %v404
    %v444 = vunpack.c.l.b16 %v405
    %v445 = vunpack.c.l.b16 %v406
    %v446 = vunpack.c.l.b16 %v407
    %v447 = vunpack.c.l.b16 %v408
    %v448 = vunpack.c.l.b16 %v409
    %v449 = vunpack.c.l.b16 %v410
    %v450 = vunpack.c.l.b16 %v411
    %v451 = vunpack.c.l.b16 %v412
    %v452 = vpack.c.b16 %v437, %v436
    %v453 = vpack.c.b16 %v439, %v438
    %v454 = vpack.c.b16 %v441, %v440
    %v455 = vpack.c.b16 %v443, %v442
    %v456 = vpack.c.b16 %v445, %v444
    %v457 = vpack.c.b16 %v447, %v446
    %v458 = vpack.c.b16 %v449, %v448
    %v459 = vpack.c.b16 %v451, %v450
    %468 = vmatprep.subr.bf16.mxu0 0
    %469 = vmatpush1.bf16.msra.mxu0 %v452
    %470 = vmatprep.subr.bf16.mxu0 0
    %471 = vmatpush1.bf16.msra.mxu0 %v453
    %472 = vmatprep.subr.bf16.mxu0 0
    %473 = vmatpush1.bf16.msra.mxu0 %v454
    %474 = vmatprep.subr.bf16.mxu0 0
    %475 = vmatpush1.bf16.msra.mxu0 %v455
    %476 = vmatprep.subr.bf16.mxu0 0
    %477 = vmatpush1.bf16.msra.mxu0 %v456
    %478 = vmatprep.subr.bf16.mxu0 0
    %479 = vmatpush1.bf16.msra.mxu0 %v457
    %480 = vmatprep.subr.bf16.mxu0 0
    %481 = vmatpush1.bf16.msra.mxu0 %v458
    %482 = vmatprep.subr.bf16.mxu0 0
    %483 = vmatpush1.bf16.msra.mxu0 %v459
    %484 = vmatprep.subr.bf16.mxu0 0
    %485 = vmatpush1.bf16.msra.mxu0 0
    %486 = vmatprep.subr.bf16.mxu0 0
    %487 = vmatpush1.bf16.msra.mxu0 0
    %488 = vmatprep.subr.bf16.mxu0 0
    %489 = vmatpush1.bf16.msra.mxu0 0
    %490 = vmatprep.subr.bf16.mxu0 0
    %491 = vmatpush1.bf16.msra.mxu0 0
    %492 = vmatprep.subr.bf16.mxu0 0
    %493 = vmatpush1.bf16.msra.mxu0 0
    %494 = vmatprep.subr.bf16.mxu0 0
    %495 = vmatpush1.bf16.msra.mxu0 0
    %496 = vmatprep.subr.bf16.mxu0 0
    %497 = vmatpush1.bf16.msra.mxu0 0
    %498 = vmatprep.subr.bf16.mxu0 0
    %499 = vmatpush1.bf16.msra.mxu0 0
    %500 = vmatprep.mubr.bf16.mxu0 0
    %501 = vmatmul.mubr.bf16.gmra.mrb[0].mxu0 %v396
    %v502 = vpop.f32.mrb[0].mxu0
    %v503 = vadd.f32 %v418, %v502
    %v504 = vpop.f32.mrb[0].mxu0
    %v505 = vpop.f32.mrb[0].mxu0
    %v506 = vpop.f32.mrb[0].mxu0
    %507 = vdwg.mxu0
    %508 = vst [vmem:[#allocation2] sm:$0x3] %v503
    // Predicated region
    $region22: #{cnn_forward.7} parent=1 // pred_check
      _
    $region23: #{cnn_forward.7} parent=1 // pred_check_branch
      %510 = sbr.rel (0) target = $region25
    $region24: #{cnn_forward.7} parent=1 // pred_region
      %s512 = ssub.s32 32, 32
      %513 = vsyncadd [#allocation3], %s512
      %s515 = sshll.u32 [#allocation2], 4
      %s516 = int_to_ptr.vmem [resolvable:$true] %s515
      %518 = dma.vmem_to_hbm [thread:$0]  %s516, 32, %s5, [#allocation3]
    $region25: #{cnn_forward.7} parent=1 // pred_fallthru
      _
    // Predicated region
    $region26: #{cnn_forward.7} parent=1 // pred_check
      _
    $region27: #{cnn_forward.7} parent=1 // pred_check_branch
      %520 = sbr.rel (0) target = $region29
    $region28: #{cnn_forward.7} parent=1 // pred_region
      %521 = dma.done [#allocation3], 32
    $region29: #{cnn_forward.7} parent=1 // pred_fallthru
      _
    %522 = vsyncpa [#allocation3], 1

</llo_original>
